<compile_context>
chip_gen: v7x
topology: tpu7x:2x2x1
jax: 0.10.0
libtpu: 0.0.40
codegen_flags: <defaults>
</compile_context>

<pallas_src>
import functools

import jax
import jax.numpy as jnp
from jax.experimental import pallas as pl
from jax.experimental.pallas import tpu as pltpu

EPS = 1e-5  # PyTorch InstanceNorm2d default eps


def _round_up(x, m):
    return (x + m - 1) // m * m


def _pick_row_tile(Ho, Wo):
    """Largest divisor TH of Ho with TH*Wo <= 128 rows per chunk."""
    th = 1
    for cand in range(1, Ho + 1):
        if Ho % cand == 0 and cand * Wo <= 128:
            th = cand
    return th


# ---------------------------------------------------------------------------
# Fused kernel: conv (one K=KH*KW*Cin MXU matmul per chunk) + InstanceNorm + ReLU
# ---------------------------------------------------------------------------
def _make_basic_conv2d_kernel(KH, KW, Ho, Wo, TH, stride):
    TP = TH * Wo          # output positions per chunk
    P = Ho * Wo
    n_chunks = Ho // TH

    def kernel(x_ref, w_ref, g_ref, bt_ref, o_ref, lhs_scr, y_scr):
        # x_ref  : (1, Hp, Wp, Cin)    spatially padded NHWC input, one sample
        # w_ref  : (KH*KW*Cin, CB)     im2col-ordered weights, one 128-ch block
        # g_ref  : (1, CB)  gamma      bt_ref : (1, CB)  beta
        # o_ref  : (1, CB, P)          transposed, lane-dense output
        # lhs_scr: VMEM (TP, KH*KW*Cin) per-chunk im2col LHS
        # y_scr  : VMEM (P, CB)        pre-norm conv output (never in vregs at once)
        Cin = x_ref.shape[-1]
        CB = w_ref.shape[-1]
        w_mat = w_ref[...]                                   # (K, CB), hoisted

        def conv_chunk(c, carry):
            s_acc, ss_acc = carry
            h0 = c * TH                                      # first output row of chunk
            # Assemble the (TP, KH*KW*Cin) im2col LHS from shifted views of the
            # VMEM-resident input block (no HBM im2col, no per-tap matmul).
            for i in range(KH):                              # trace-time unrolled
                for j in range(KW):
                    if stride == 1:
                        tap = x_ref[0, pl.ds(h0 + i, TH), pl.ds(j, Wo), :]
                    else:
                        # TODO(synk): stride>1 strided-ds path is untested here.
                        tap = x_ref[0, pl.ds(h0 * stride + i, TH, stride),
                                    pl.ds(j, Wo, stride), :]
                    col = (i * KW + j) * Cin
                    lhs_scr[:, col:col + Cin] = tap.reshape(TP, Cin)
            # ONE MXU matmul with K = KH*KW*Cin (f32 accumulate).
            y = jnp.dot(lhs_scr[...], w_mat,
                        preferred_element_type=jnp.float32)  # (TP, CB)
            r0 = pl.multiple_of(c * TP, TP)
            y_scr[pl.ds(r0, TP), :] = y
            return (s_acc + jnp.sum(y, axis=0, keepdims=True),
                    ss_acc + jnp.sum(y * y, axis=0, keepdims=True))

        zero = jnp.zeros((1, CB), jnp.float32)
        s, ss = jax.lax.fori_loop(0, n_chunks, conv_chunk, (zero, zero))

        # Per-channel InstanceNorm stats over all P spatial positions.
        inv_p = 1.0 / float(P)
        mean = s * inv_p                                     # (1, CB)
        var = jnp.maximum(ss * inv_p - mean * mean, 0.0)     # clamp tiny negatives
        scale = jax.lax.rsqrt(var + EPS) * g_ref[...]
        shift = bt_ref[...] - mean * scale

        # Normalize + ReLU + transposed store (static lane-aligned slices).
        for c in range(n_chunks):
            y = y_scr[c * TP:(c + 1) * TP, :]                # (TP, CB)
            out = jnp.maximum(y * scale + shift, 0.0)
            o_ref[0, :, c * TP:(c + 1) * TP] = out.T         # (CB, TP) lane-dense

    return kernel


# ---------------------------------------------------------------------------
# Wrapper (PyTorch-style NCHW interface, OIHW weights)
# ---------------------------------------------------------------------------
def basic_conv2d(x_nchw, w_oihw, b, gamma, beta, *, stride=1, padding=0):
    N, Cin, H, W = x_nchw.shape
    Cout, Cin_w, KH, KW = w_oihw.shape
    assert Cin == Cin_w
    # The conv bias `b` is mathematically cancelled by InstanceNorm's mean
    # subtraction (mean/var are shift-invariant per channel), so it is ignored.
    del b

    Ho = (H + 2 * padding - KH) // stride + 1
    Wo = (W + 2 * padding - KW) // stride + 1
    P = Ho * Wo
    K = KH * KW * Cin
    CB = 128                                # output-channel block (lane width)
    Cp = _round_up(Cout, CB)
    n_cb = Cp // CB

    # NCHW -> NHWC (channels on lanes), spatial zero padding only.
    x = jnp.transpose(x_nchw, (0, 2, 3, 1))
    if padding:
        x = jnp.pad(x, ((0, 0), (padding, padding), (padding, padding), (0, 0)))
    Hp, Wp = x.shape[1], x.shape[2]

    # OIHW -> im2col order (KH, KW, Cin, Cout) -> (K, Cout), pad Cout -> Cp.
    w = jnp.transpose(w_oihw, (2, 3, 1, 0)).reshape(K, Cout)
    w = jnp.pad(w, ((0, 0), (0, Cp - Cout)))
    gp = jnp.pad(gamma, (0, Cp - Cout)).reshape(1, Cp)
    btp = jnp.pad(beta, (0, Cp - Cout)).reshape(1, Cp)

    TH = _pick_row_tile(Ho, Wo)
    kernel = _make_basic_conv2d_kernel(KH, KW, Ho, Wo, TH, stride)

    out = pl.pallas_call(
        kernel,
        out_shape=jax.ShapeDtypeStruct((N, Cp, P), jnp.float32),
        grid=(N, n_cb),
        in_specs=[
            pl.BlockSpec((1, Hp, Wp, Cin), lambda n, cb: (n, 0, 0, 0)),
            pl.BlockSpec((K, CB), lambda n, cb: (0, cb)),
            pl.BlockSpec((1, CB), lambda n, cb: (0, cb)),
            pl.BlockSpec((1, CB), lambda n, cb: (0, cb)),
        ],
        out_specs=pl.BlockSpec((1, CB, P), lambda n, cb: (n, cb, 0)),
        scratch_shapes=[
            pltpu.VMEM((TH * Wo, K), jnp.float32),   # per-chunk im2col LHS
            pltpu.VMEM((P, CB), jnp.float32),        # pre-norm conv output
        ],
        compiler_params=pltpu.CompilerParams(
            dimension_semantics=("parallel", "parallel")),
    )(x, w, gp, btp)

    # Channel slice on a major axis + free reshape -> NCHW (no transpose round trip).
    return out[:, :Cout, :].reshape(N, Cout, Ho, Wo)


# ---------------------------------------------------------------------------
# Pure-JAX reference (matches the PyTorch module semantics, bias included)
# ---------------------------------------------------------------------------
def basic_conv2d_ref(x, w, b, gamma, beta, *, stride=1, padding=0):
    y = jax.lax.conv_general_dilated(
        x, w, window_strides=(stride, stride),
        padding=[(padding, padding), (padding, padding)],
        dimension_numbers=("NCHW", "OIHW", "NCHW"),
        precision=jax.lax.Precision.HIGHEST)
    y = y + b[None, :, None, None]
    mean = jnp.mean(y, axis=(2, 3), keepdims=True)
    var = jnp.var(y, axis=(2, 3), keepdims=True)   # biased, like InstanceNorm2d
    y = (y - mean) * jax.lax.rsqrt(var + EPS)
    y = y * gamma[None, :, None, None] + beta[None, :, None, None]
    return jnp.maximum(y, 0.0)


# ---------------------------------------------------------------------------
if __name__ == "__main__":
    key = jax.random.PRNGKey(0)
    N, Cin, H, W = 2, 4, 16, 16
    configs = [
        dict(Cout=64, k=3, stride=1, padding=1),   # 3x3 conv, K=36,  Cout 64 -> 128
        dict(Cout=48, k=5, stride=1, padding=2),   # 5x5 conv, K=100, Cout 48 -> 128
    ]

    kx, *kws = jax.random.split(key, 1 + 4 * len(configs))
    x = jax.random.normal(kx, (N, Cin, H, W), jnp.float32)

    for ci, cfg in enumerate(configs):
        k1, k2, k3, k4 = kws[4 * ci:4 * ci + 4]
        Cout, ksz = cfg["Cout"], cfg["k"]
        w = 0.1 * jax.random.normal(k1, (Cout, Cin, ksz, ksz), jnp.float32)
        b = 0.1 * jax.random.normal(k2, (Cout,), jnp.float32)
        gamma = 1.0 + 0.1 * jax.random.normal(k3, (Cout,), jnp.float32)
        beta = 0.1 * jax.random.normal(k4, (Cout,), jnp.float32)

        fwd = jax.jit(functools.partial(
            basic_conv2d, stride=cfg["stride"], padding=cfg["padding"]))
        out = jax.block_until_ready(fwd(x, w, b, gamma, beta))

        ref = basic_conv2d_ref(x, w, b, gamma, beta,
                               stride=cfg["stride"], padding=cfg["padding"])
        assert out.shape == ref.shape, (out.shape, ref.shape)
        assert bool(jnp.all(jnp.isfinite(out)))
        max_err = float(jnp.max(jnp.abs(out - ref)))
        assert max_err < 2e-3, max_err

    print("KERNEL_OK")
</pallas_src>

<mosaic_0001>
module attributes {stable_mosaic.version = 11 : i64} {
  func.func @kernel(%arg0: i32, %arg1: i32, %arg2: memref<1x18x18x4xf32, #tpu.memory_space<vmem>>, %arg3: memref<36x128xf32, #tpu.memory_space<vmem>>, %arg4: memref<1x128xf32, #tpu.memory_space<vmem>>, %arg5: memref<1x128xf32, #tpu.memory_space<vmem>>, %arg6: memref<1x128x256xf32, #tpu.memory_space<vmem>>, %arg7: memref<128x36xf32, #tpu.memory_space<vmem>>, %arg8: memref<256x128xf32, #tpu.memory_space<vmem>>) attributes {dimension_semantics = [#tpu.dimension_semantics<parallel>, #tpu.dimension_semantics<parallel>], iteration_bounds = array<i64: 2, 1>, scalar_prefetch = 0 : i64, scratch_operands = 2 : i64, tpu.core_type = #tpu.core_type<tc>, window_params = [{transform_indices = @transform_0, window_bounds = array<i64: 1, 18, 18, 4>}, {transform_indices = @transform_1, window_bounds = array<i64: 36, 128>}, {transform_indices = @transform_2, window_bounds = array<i64: 1, 128>}, {transform_indices = @transform_3, window_bounds = array<i64: 1, 128>}, {transform_indices = @transform_4, window_bounds = array<i64: 1, 128, 256>}]} {
    %c0 = arith.constant 0 : index
    %c0_0 = arith.constant 0 : index
    %0 = vector.load %arg3[%c0, %c0_0] : memref<36x128xf32, #tpu.memory_space<vmem>>, vector<36x128xf32>
    %cst = arith.constant 0.000000e+00 : f32
    %1 = vector.broadcast %cst : f32 to vector<1x128xf32>
    %c0_i32 = arith.constant 0 : i32
    %c2_i32 = arith.constant 2 : i32
    %2 = arith.addi %c0_i32, %c2_i32 : i32
    %c1_i32 = arith.constant 1 : i32
    %3:2 = scf.for %arg9 = %c0_i32 to %2 step %c1_i32 iter_args(%arg10 = %1, %arg11 = %1) -> (vector<1x128xf32>, vector<1x128xf32>)  : i32 {
      %c8_i32 = arith.constant 8 : i32
      %42 = arith.muli %arg9, %c8_i32 : i32
      %c0_i32_21 = arith.constant 0 : i32
      %43 = arith.addi %42, %c0_i32_21 : i32
      %c0_22 = arith.constant 0 : index
      %44 = arith.index_cast %43 : i32 to index
      %c0_23 = arith.constant 0 : index
      %c0_24 = arith.constant 0 : index
      %45 = vector.load %arg2[%c0_22, %44, %c0_23, %c0_24] : memref<1x18x18x4xf32, #tpu.memory_space<vmem>>, vector<1x8x16x4xf32>
      %46 = vector.shape_cast %45 : vector<1x8x16x4xf32> to vector<8x16x4xf32>
      %47 = vector.shape_cast %46 : vector<8x16x4xf32> to vector<128x4xf32>
      %c0_25 = arith.constant 0 : index
      %c0_26 = arith.constant 0 : index
      %48 = vector.load %arg7[%c0_25, %c0_26] : memref<128x36xf32, #tpu.memory_space<vmem>>, vector<128x4xf32>
      tpu.vector_store %arg7[%c0_25, %c0_26], %47 {strides = array<i32>} : memref<128x36xf32, #tpu.memory_space<vmem>>, vector<128x4xf32>,
      %c0_i32_27 = arith.constant 0 : i32
      %49 = arith.addi %42, %c0_i32_27 : i32
      %c0_28 = arith.constant 0 : index
      %50 = arith.index_cast %49 : i32 to index
      %c1 = arith.constant 1 : index
      %c0_29 = arith.constant 0 : index
      %51 = vector.load %arg2[%c0_28, %50, %c1, %c0_29] : memref<1x18x18x4xf32, #tpu.memory_space<vmem>>, vector<1x8x16x4xf32>
      %52 = vector.shape_cast %51 : vector<1x8x16x4xf32> to vector<8x16x4xf32>
      %53 = vector.shape_cast %52 : vector<8x16x4xf32> to vector<128x4xf32>
      %c0_30 = arith.constant 0 : index
      %c4 = arith.constant 4 : index
      %54 = vector.load %arg7[%c0_30, %c4] : memref<128x36xf32, #tpu.memory_space<vmem>>, vector<128x4xf32>
      tpu.vector_store %arg7[%c0_30, %c4], %53 {strides = array<i32>} : memref<128x36xf32, #tpu.memory_space<vmem>>, vector<128x4xf32>,
      %c0_i32_31 = arith.constant 0 : i32
      %55 = arith.addi %42, %c0_i32_31 : i32
      %c0_32 = arith.constant 0 : index
      %56 = arith.index_cast %55 : i32 to index
      %c2 = arith.constant 2 : index
      %c0_33 = arith.constant 0 : index
      %57 = vector.load %arg2[%c0_32, %56, %c2, %c0_33] : memref<1x18x18x4xf32, #tpu.memory_space<vmem>>, vector<1x8x16x4xf32>
      %58 = vector.shape_cast %57 : vector<1x8x16x4xf32> to vector<8x16x4xf32>
      %59 = vector.shape_cast %58 : vector<8x16x4xf32> to vector<128x4xf32>
      %c0_34 = arith.constant 0 : index
      %c8 = arith.constant 8 : index
      %60 = vector.load %arg7[%c0_34, %c8] : memref<128x36xf32, #tpu.memory_space<vmem>>, vector<128x4xf32>
      tpu.vector_store %arg7[%c0_34, %c8], %59 {strides = array<i32>} : memref<128x36xf32, #tpu.memory_space<vmem>>, vector<128x4xf32>,
      %c1_i32_35 = arith.constant 1 : i32
      %61 = arith.addi %42, %c1_i32_35 : i32
      %c0_36 = arith.constant 0 : index
      %62 = arith.index_cast %61 : i32 to index
      %c0_37 = arith.constant 0 : index
      %c0_38 = arith.constant 0 : index
      %63 = vector.load %arg2[%c0_36, %62, %c0_37, %c0_38] : memref<1x18x18x4xf32, #tpu.memory_space<vmem>>, vector<1x8x16x4xf32>
      %64 = vector.shape_cast %63 : vector<1x8x16x4xf32> to vector<8x16x4xf32>
      %65 = vector.shape_cast %64 : vector<8x16x4xf32> to vector<128x4xf32>
      %c0_39 = arith.constant 0 : index
      %c12 = arith.constant 12 : index
      %66 = vector.load %arg7[%c0_39, %c12] : memref<128x36xf32, #tpu.memory_space<vmem>>, vector<128x4xf32>
      tpu.vector_store %arg7[%c0_39, %c12], %65 {strides = array<i32>} : memref<128x36xf32, #tpu.memory_space<vmem>>, vector<128x4xf32>,
      %c1_i32_40 = arith.constant 1 : i32
      %67 = arith.addi %42, %c1_i32_40 : i32
      %c0_41 = arith.constant 0 : index
      %68 = arith.index_cast %67 : i32 to index
      %c1_42 = arith.constant 1 : index
      %c0_43 = arith.constant 0 : index
      %69 = vector.load %arg2[%c0_41, %68, %c1_42, %c0_43] : memref<1x18x18x4xf32, #tpu.memory_space<vmem>>, vector<1x8x16x4xf32>
      %70 = vector.shape_cast %69 : vector<1x8x16x4xf32> to vector<8x16x4xf32>
      %71 = vector.shape_cast %70 : vector<8x16x4xf32> to vector<128x4xf32>
      %c0_44 = arith.constant 0 : index
      %c16 = arith.constant 16 : index
      %72 = vector.load %arg7[%c0_44, %c16] : memref<128x36xf32, #tpu.memory_space<vmem>>, vector<128x4xf32>
      tpu.vector_store %arg7[%c0_44, %c16], %71 {strides = array<i32>} : memref<128x36xf32, #tpu.memory_space<vmem>>, vector<128x4xf32>,
      %c1_i32_45 = arith.constant 1 : i32
      %73 = arith.addi %42, %c1_i32_45 : i32
      %c0_46 = arith.constant 0 : index
      %74 = arith.index_cast %73 : i32 to index
      %c2_47 = arith.constant 2 : index
      %c0_48 = arith.constant 0 : index
      %75 = vector.load %arg2[%c0_46, %74, %c2_47, %c0_48] : memref<1x18x18x4xf32, #tpu.memory_space<vmem>>, vector<1x8x16x4xf32>
      %76 = vector.shape_cast %75 : vector<1x8x16x4xf32> to vector<8x16x4xf32>
      %77 = vector.shape_cast %76 : vector<8x16x4xf32> to vector<128x4xf32>
      %c0_49 = arith.constant 0 : index
      %c20 = arith.constant 20 : index
      %78 = vector.load %arg7[%c0_49, %c20] : memref<128x36xf32, #tpu.memory_space<vmem>>, vector<128x4xf32>
      tpu.vector_store %arg7[%c0_49, %c20], %77 {strides = array<i32>} : memref<128x36xf32, #tpu.memory_space<vmem>>, vector<128x4xf32>,
      %c2_i32_50 = arith.constant 2 : i32
      %79 = arith.addi %42, %c2_i32_50 : i32
      %c0_51 = arith.constant 0 : index
      %80 = arith.index_cast %79 : i32 to index
      %c0_52 = arith.constant 0 : index
      %c0_53 = arith.constant 0 : index
      %81 = vector.load %arg2[%c0_51, %80, %c0_52, %c0_53] : memref<1x18x18x4xf32, #tpu.memory_space<vmem>>, vector<1x8x16x4xf32>
      %82 = vector.shape_cast %81 : vector<1x8x16x4xf32> to vector<8x16x4xf32>
      %83 = vector.shape_cast %82 : vector<8x16x4xf32> to vector<128x4xf32>
      %c0_54 = arith.constant 0 : index
      %c24 = arith.constant 24 : index
      %84 = vector.load %arg7[%c0_54, %c24] : memref<128x36xf32, #tpu.memory_space<vmem>>, vector<128x4xf32>
      tpu.vector_store %arg7[%c0_54, %c24], %83 {strides = array<i32>} : memref<128x36xf32, #tpu.memory_space<vmem>>, vector<128x4xf32>,
      %c2_i32_55 = arith.constant 2 : i32
      %85 = arith.addi %42, %c2_i32_55 : i32
      %c0_56 = arith.constant 0 : index
      %86 = arith.index_cast %85 : i32 to index
      %c1_57 = arith.constant 1 : index
      %c0_58 = arith.constant 0 : index
      %87 = vector.load %arg2[%c0_56, %86, %c1_57, %c0_58] : memref<1x18x18x4xf32, #tpu.memory_space<vmem>>, vector<1x8x16x4xf32>
      %88 = vector.shape_cast %87 : vector<1x8x16x4xf32> to vector<8x16x4xf32>
      %89 = vector.shape_cast %88 : vector<8x16x4xf32> to vector<128x4xf32>
      %c0_59 = arith.constant 0 : index
      %c28 = arith.constant 28 : index
      %90 = vector.load %arg7[%c0_59, %c28] : memref<128x36xf32, #tpu.memory_space<vmem>>, vector<128x4xf32>
      tpu.vector_store %arg7[%c0_59, %c28], %89 {strides = array<i32>} : memref<128x36xf32, #tpu.memory_space<vmem>>, vector<128x4xf32>,
      %c2_i32_60 = arith.constant 2 : i32
      %91 = arith.addi %42, %c2_i32_60 : i32
      %c0_61 = arith.constant 0 : index
      %92 = arith.index_cast %91 : i32 to index
      %c2_62 = arith.constant 2 : index
      %c0_63 = arith.constant 0 : index
      %93 = vector.load %arg2[%c0_61, %92, %c2_62, %c0_63] : memref<1x18x18x4xf32, #tpu.memory_space<vmem>>, vector<1x8x16x4xf32>
      %94 = vector.shape_cast %93 : vector<1x8x16x4xf32> to vector<8x16x4xf32>
      %95 = vector.shape_cast %94 : vector<8x16x4xf32> to vector<128x4xf32>
      %c0_64 = arith.constant 0 : index
      %c32 = arith.constant 32 : index
      %96 = vector.load %arg7[%c0_64, %c32] : memref<128x36xf32, #tpu.memory_space<vmem>>, vector<128x4xf32>
      tpu.vector_store %arg7[%c0_64, %c32], %95 {strides = array<i32>} : memref<128x36xf32, #tpu.memory_space<vmem>>, vector<128x4xf32>,
      %c0_65 = arith.constant 0 : index
      %c0_66 = arith.constant 0 : index
      %97 = vector.load %arg7[%c0_65, %c0_66] : memref<128x36xf32, #tpu.memory_space<vmem>>, vector<128x36xf32>
      %cst_67 = arith.constant dense<0.000000e+00> : vector<128x128xf32>
      %98 = tpu.matmul %97, %0, %cst_67 {dimension_numbers = #tpu.dot_dimension_numbers<[1], [0], [0], [1], [0, 0, 1, 1], [], []>} : vector<128x36xf32>, vector<36x128xf32>, vector<128x128xf32> -> vector<128x128xf32>
      %c128_i32 = arith.constant 128 : i32
      %99 = arith.muli %arg9, %c128_i32 : i32
      %100 = tpu.assume_multiple %99, 128 : i32
      %101 = arith.index_cast %100 : i32 to index
      %c0_68 = arith.constant 0 : index
      %102 = vector.load %arg8[%101, %c0_68] : memref<256x128xf32, #tpu.memory_space<vmem>>, vector<128x128xf32>
      tpu.vector_store %arg8[%101, %c0_68], %98 {strides = array<i32>} : memref<256x128xf32, #tpu.memory_space<vmem>>, vector<128x128xf32>,
      %cst_69 = arith.constant dense<0.000000e+00> : vector<128xf32>
      %103 = vector.multi_reduction <add>, %98, %cst_69 [0] : vector<128x128xf32> to vector<128xf32>
      %104 = vector.shape_cast %103 : vector<128xf32> to vector<1x128xf32>
      %105 = arith.addf %arg10, %104 : vector<1x128xf32>
      %106 = arith.mulf %98, %98 : vector<128x128xf32>
      %cst_70 = arith.constant dense<0.000000e+00> : vector<128xf32>
      %107 = vector.multi_reduction <add>, %106, %cst_70 [0] : vector<128x128xf32> to vector<128xf32>
      %108 = vector.shape_cast %107 : vector<128xf32> to vector<1x128xf32>
      %109 = arith.addf %arg11, %108 : vector<1x128xf32>
      scf.yield %105, %109 : vector<1x128xf32>, vector<1x128xf32>
    }
    %c2_i32_1 = arith.constant 2 : i32
    %cst_2 = arith.constant 3.906250e-03 : f32
    %4 = vector.broadcast %cst_2 : f32 to vector<1x128xf32>
    %5 = arith.mulf %3#0, %4 : vector<1x128xf32>
    %cst_3 = arith.constant 3.906250e-03 : f32
    %6 = vector.broadcast %cst_3 : f32 to vector<1x128xf32>
    %7 = arith.mulf %3#1, %6 : vector<1x128xf32>
    %8 = arith.mulf %5, %5 : vector<1x128xf32>
    %9 = arith.subf %7, %8 : vector<1x128xf32>
    %cst_4 = arith.constant 0.000000e+00 : f32
    %10 = vector.broadcast %cst_4 : f32 to vector<1x128xf32>
    %11 = arith.maximumf %9, %10 : vector<1x128xf32>
    %cst_5 = arith.constant 9.99999974E-6 : f32
    %12 = vector.broadcast %cst_5 : f32 to vector<1x128xf32>
    %13 = arith.addf %11, %12 : vector<1x128xf32>
    %14 = math.rsqrt %13 : vector<1x128xf32>
    %c0_6 = arith.constant 0 : index
    %c0_7 = arith.constant 0 : index
    %15 = vector.load %arg4[%c0_6, %c0_7] : memref<1x128xf32, #tpu.memory_space<vmem>>, vector<1x128xf32>
    %16 = arith.mulf %14, %15 : vector<1x128xf32>
    %c0_8 = arith.constant 0 : index
    %c0_9 = arith.constant 0 : index
    %17 = vector.load %arg5[%c0_8, %c0_9] : memref<1x128xf32, #tpu.memory_space<vmem>>, vector<1x128xf32>
    %18 = arith.mulf %5, %16 : vector<1x128xf32>
    %19 = arith.subf %17, %18 : vector<1x128xf32>
    %c0_10 = arith.constant 0 : index
    %c0_11 = arith.constant 0 : index
    %20 = vector.load %arg8[%c0_10, %c0_11] : memref<256x128xf32, #tpu.memory_space<vmem>>, vector<128x128xf32>
    %21 = vector.broadcast %16 : vector<1x128xf32> to vector<128x128xf32>
    %22 = arith.mulf %20, %21 : vector<128x128xf32>
    %23 = vector.broadcast %19 : vector<1x128xf32> to vector<128x128xf32>
    %24 = arith.addf %22, %23 : vector<128x128xf32>
    %cst_12 = arith.constant 0.000000e+00 : f32
    %25 = vector.broadcast %cst_12 : f32 to vector<128x128xf32>
    %26 = arith.maximumf %24, %25 : vector<128x128xf32>
    %27 = tpu.transpose %26, [1, 0] : vector<128x128xf32> -> vector<128x128xf32>
    %c0_13 = arith.constant 0 : index
    %c0_14 = arith.constant 0 : index
    %c0_15 = arith.constant 0 : index
    %28 = vector.load %arg6[%c0_13, %c0_14, %c0_15] : memref<1x128x256xf32, #tpu.memory_space<vmem>>, vector<1x128x128xf32>
    %29 = vector.shape_cast %28 : vector<1x128x128xf32> to vector<128x128xf32>
    %30 = vector.shape_cast %27 : vector<128x128xf32> to vector<1x128x128xf32>
    tpu.vector_store %arg6[%c0_13, %c0_14, %c0_15], %30 {strides = array<i32>} : memref<1x128x256xf32, #tpu.memory_space<vmem>>, vector<1x128x128xf32>,
    %c128 = arith.constant 128 : index
    %c0_16 = arith.constant 0 : index
    %31 = vector.load %arg8[%c128, %c0_16] : memref<256x128xf32, #tpu.memory_space<vmem>>, vector<128x128xf32>
    %32 = vector.broadcast %16 : vector<1x128xf32> to vector<128x128xf32>
    %33 = arith.mulf %31, %32 : vector<128x128xf32>
    %34 = vector.broadcast %19 : vector<1x128xf32> to vector<128x128xf32>
    %35 = arith.addf %33, %34 : vector<128x128xf32>
    %cst_17 = arith.constant 0.000000e+00 : f32
    %36 = vector.broadcast %cst_17 : f32 to vector<128x128xf32>
    %37 = arith.maximumf %35, %36 : vector<128x128xf32>
    %38 = tpu.transpose %37, [1, 0] : vector<128x128xf32> -> vector<128x128xf32>
    %c0_18 = arith.constant 0 : index
    %c0_19 = arith.constant 0 : index
    %c128_20 = arith.constant 128 : index
    %39 = vector.load %arg6[%c0_18, %c0_19, %c128_20] : memref<1x128x256xf32, #tpu.memory_space<vmem>>, vector<1x128x128xf32>
    %40 = vector.shape_cast %39 : vector<1x128x128xf32> to vector<128x128xf32>
    %41 = vector.shape_cast %38 : vector<128x128xf32> to vector<1x128x128xf32>
    tpu.vector_store %arg6[%c0_18, %c0_19, %c128_20], %41 {strides = array<i32>} : memref<1x128x256xf32, #tpu.memory_space<vmem>>, vector<1x128x128xf32>,
    return
  }
  func.func @transform_0(%arg0: i32, %arg1: i32) -> (i32, i32, i32, i32) {
    %c0_i32 = arith.constant 0 : i32
    %c0_i32_0 = arith.constant 0 : i32
    %c0_i32_1 = arith.constant 0 : i32
    %c0_i32_2 = arith.constant 0 : i32
    return %arg0, %c0_i32, %c0_i32_0, %c0_i32_1 : i32, i32, i32, i32
  }
  func.func @transform_1(%arg0: i32, %arg1: i32) -> (i32, i32) {
    %c0_i32 = arith.constant 0 : i32
    %c0_i32_0 = arith.constant 0 : i32
    return %c0_i32, %arg1 : i32, i32
  }
  func.func @transform_2(%arg0: i32, %arg1: i32) -> (i32, i32) {
    %c0_i32 = arith.constant 0 : i32
    %c0_i32_0 = arith.constant 0 : i32
    return %c0_i32, %arg1 : i32, i32
  }
  func.func @transform_3(%arg0: i32, %arg1: i32) -> (i32, i32) {
    %c0_i32 = arith.constant 0 : i32
    %c0_i32_0 = arith.constant 0 : i32
    return %c0_i32, %arg1 : i32, i32
  }
  func.func @transform_4(%arg0: i32, %arg1: i32) -> (i32, i32, i32) {
    %c0_i32 = arith.constant 0 : i32
    %c0_i32_0 = arith.constant 0 : i32
    return %arg0, %arg1, %c0_i32 : i32, i32, i32
  }
}

</mosaic_0001>

<llo_original>
// kernel: basic_conv2d.1
$region0: #{basic_conv2d.1}
  #allocation0 [shape = 'u32[]', space=smem, size = 0x4, offset = 0x4, fixed_abs, tag = 'smem constant byte address 0x4 - core index']
  #allocation1 [shape = 'u32[144,128]{1,0:T(1,128)}', space=vmem, size = 0x12000, scoped, tag = 'internal scratch']
  #allocation2 [shape = 'f32[128,36]{1,0:T(8,128)}', space=vmem, size = 0x10000, scoped, tag = 'scratch operand']
  #allocation3 [shape = 'f32[256,128]{1,0:T(8,128)}', space=vmem, size = 0x20000, scoped, tag = 'scratch operand']
  %s0 = inlined_call_operand.vmem [shape: f32[2,18,18,4], index: 0, kind: input, shape index: {}]
  %s1 = inlined_call_operand.vmem [shape: f32[36,128], index: 1, kind: input, shape index: {}]
  %s2 = inlined_call_operand.vmem [shape: f32[1,128], index: 2, kind: input, shape index: {}]
  %s3 = inlined_call_operand.vmem [shape: f32[1,128], index: 3, kind: input, shape index: {}]
  %s4 = inlined_call_operand.vmem [shape: f32[2,128,256], index: 4, kind: output, shape index: {}]
  %s5 = sld [smem:[#allocation0]]
  $region56: #{basic_conv2d.1} parent=0
    _
  %s7 = ssub.s32 1, %s5
  %s8 = scalar_select 0, %s7, %s5
  loop: start=0, step=1, limit=4
  $region2: #{basic_conv2d.1} parent=0 // loop_pre_header
    _
  $region3: #{basic_conv2d.1} parent=0 // loop_header
    %s10 = sphi 0, %s14
    %p11 = scmp.ge.s32.totalorder %s10, 4
    %s17 = sphi 0, %s29
    %s18 = sphi 0, %s25
    %s19 = sphi 0, %s17
    %s20 = sphi 0, %s18
    %s21 = sphi 0, %s19
    %s22 = sphi 0, %s20
    %s32 = sphi 0, %s34
    %s35 = sphi 0, %s32
    %s36 = sphi 0, %s35
    %s52 = sphi 0, %s36
    %s58 = sphi 0, %s60
    %s61 = sphi 0, %s58
    %s62 = sphi 0, %s61
    %s78 = sphi 0, %s62
    %s84 = sphi 0, %s86
    %s87 = sphi 0, %s84
    %s88 = sphi 0, %s87
    %s104 = sphi 0, %s88
    %s110 = sphi 0, %s112
    %s113 = sphi 0, %s110
    %s114 = sphi 0, %s113
    %s130 = sphi 0, %s114
    %s138 = sphi 0, %s140
    %s141 = sphi 0, %s138
    %s142 = sphi 0, %s141
    %s158 = sphi 0, %s142
  $region4: #{basic_conv2d.1} parent=0 // loop_header_branch
    %13 = sbr.rel (%p11) target = $region8
  $region5: #{basic_conv2d.1} parent=0 // loop_body
    %s15 = ssub.s32 %s10, 1
    %s16 = ssub.s32 %s10, 2
    %s23 = sadd.s32 1, %s18
    %p24 = scmp.ge.s32.totalorder %s23, 1
    %s25 = scalar_select %p24, 0, %s23
    %s26 = sadd.s32 1, %s17
    %s27 = scalar_select %p24, %s26, %s17
    %p28 = scmp.ge.s32.totalorder %s27, 2
    %s29 = scalar_select %p28, 0, %s27
    %s30 = ssub.s32 %s17, %s29
    %p31 = scmp.eq.s32.totalorder %s30, 0
    %s33 = sadd.s32 %s32, 1
    %s34 = scalar_select %p31, %s32, %s33
    %p37 = pneg %p31
    %p38 = scmp.eq.s32.totalorder %s10, 1
    %p39 = por %p37, %p38
    %p40 = scmp.ne.s32.totalorder %s32, %s35
    %p41 = scmp.eq.s32.totalorder %s10, 0
    %p42 = por %p40, %p41
    %p43 = scmp.ne.s32.totalorder %s32, %s35
    %p44 = scmp.eq.s32.totalorder %s15, 1
    %p45 = por %p43, %p44
    %p46 = scmp.ne.s32.totalorder %s35, %s36
    %p47 = scmp.eq.s32.totalorder %s15, 0
    %p48 = por %p46, %p47
    %p49 = scmp.ne.s32.totalorder %s35, %s36
    %p50 = scmp.eq.s32.totalorder %s16, 1
    %p51 = por %p49, %p50
    %p53 = scmp.ne.s32.totalorder %s36, %s52
    %p54 = scmp.eq.s32.totalorder %s16, 0
    %p55 = por %p53, %p54
    %s56 = ssub.s32 %s18, %s25
    %p57 = scmp.eq.s32.totalorder %s56, 0
    %s59 = sadd.s32 %s58, 1
    %s60 = scalar_select %p57, %s58, %s59
    %p63 = pneg %p57
    %p64 = scmp.eq.s32.totalorder %s10, 1
    %p65 = por %p63, %p64
    %p66 = scmp.ne.s32.totalorder %s58, %s61
    %p67 = scmp.eq.s32.totalorder %s10, 0
    %p68 = por %p66, %p67
    %p69 = scmp.ne.s32.totalorder %s58, %s61
    %p70 = scmp.eq.s32.totalorder %s15, 1
    %p71 = por %p69, %p70
    %p72 = scmp.ne.s32.totalorder %s61, %s62
    %p73 = scmp.eq.s32.totalorder %s15, 0
    %p74 = por %p72, %p73
    %p75 = scmp.ne.s32.totalorder %s61, %s62
    %p76 = scmp.eq.s32.totalorder %s16, 1
    %p77 = por %p75, %p76
    %p79 = scmp.ne.s32.totalorder %s62, %s78
    %p80 = scmp.eq.s32.totalorder %s16, 0
    %p81 = por %p79, %p80
    %s82 = ssub.s32 %s18, %s25
    %p83 = scmp.eq.s32.totalorder %s82, 0
    %s85 = sadd.s32 %s84, 1
    %s86 = scalar_select %p83, %s84, %s85
    %p89 = pneg %p83
    %p90 = scmp.eq.s32.totalorder %s10, 1
    %p91 = por %p89, %p90
    %p92 = scmp.ne.s32.totalorder %s84, %s87
    %p93 = scmp.eq.s32.totalorder %s10, 0
    %p94 = por %p92, %p93
    %p95 = scmp.ne.s32.totalorder %s84, %s87
    %p96 = scmp.eq.s32.totalorder %s15, 1
    %p97 = por %p95, %p96
    %p98 = scmp.ne.s32.totalorder %s87, %s88
    %p99 = scmp.eq.s32.totalorder %s15, 0
    %p100 = por %p98, %p99
    %p101 = scmp.ne.s32.totalorder %s87, %s88
    %p102 = scmp.eq.s32.totalorder %s16, 1
    %p103 = por %p101, %p102
    %p105 = scmp.ne.s32.totalorder %s88, %s104
    %p106 = scmp.eq.s32.totalorder %s16, 0
    %p107 = por %p105, %p106
    %s108 = ssub.s32 %s18, %s25
    %p109 = scmp.eq.s32.totalorder %s108, 0
    %s111 = sadd.s32 %s110, 1
    %s112 = scalar_select %p109, %s110, %s111
    %p115 = pneg %p109
    %p116 = scmp.eq.s32.totalorder %s10, 1
    %p117 = por %p115, %p116
    %p118 = scmp.ne.s32.totalorder %s110, %s113
    %p119 = scmp.eq.s32.totalorder %s10, 0
    %p120 = por %p118, %p119
    %p121 = scmp.ne.s32.totalorder %s110, %s113
    %p122 = scmp.eq.s32.totalorder %s15, 1
    %p123 = por %p121, %p122
    %p124 = scmp.ne.s32.totalorder %s113, %s114
    %p125 = scmp.eq.s32.totalorder %s15, 0
    %p126 = por %p124, %p125
    %p127 = scmp.ne.s32.totalorder %s113, %s114
    %p128 = scmp.eq.s32.totalorder %s16, 1
    %p129 = por %p127, %p128
    %p131 = scmp.ne.s32.totalorder %s114, %s130
    %p132 = scmp.eq.s32.totalorder %s16, 0
    %p133 = por %p131, %p132
    %s134 = ssub.s32 %s17, %s29
    %s135 = ssub.s32 %s18, %s25
    %s136 = sor.u32 %s134, %s135
    %p137 = scmp.eq.s32.totalorder %s136, 0
    %s139 = sadd.s32 %s138, 1
    %s140 = scalar_select %p137, %s138, %s139
    %p143 = pneg %p137
    %p144 = scmp.eq.s32.totalorder %s10, 1
    %p145 = por %p143, %p144
    %p146 = scmp.ne.s32.totalorder %s138, %s141
    %p147 = scmp.eq.s32.totalorder %s10, 0
    %p148 = por %p146, %p147
    %p149 = scmp.ne.s32.totalorder %s138, %s141
    %p150 = scmp.eq.s32.totalorder %s15, 1
    %p151 = por %p149, %p150
    %p152 = scmp.ne.s32.totalorder %s141, %s142
    %p153 = scmp.eq.s32.totalorder %s15, 0
    %p154 = por %p152, %p153
    %p155 = scmp.ne.s32.totalorder %s141, %s142
    %p156 = scmp.eq.s32.totalorder %s16, 1
    %p157 = por %p155, %p156
    %p159 = scmp.ne.s32.totalorder %s142, %s158
    %p160 = scmp.eq.s32.totalorder %s16, 0
    %p161 = por %p159, %p160
    %p162 = scmp.le.s32.totalorder 1, %s10
    %p163 = scmp.lt.s32.totalorder %s10, 3
    %p164 = pnand %p162, %p163
    %p165 = pneg %p164
    // Predicated region
    $region9: #{basic_conv2d.1} parent=5 // pred_check
      _
    $region10: #{basic_conv2d.1} parent=5 // pred_check_branch
      %167 = sbr.rel (%p164) target = $region12
    $region11: #{basic_conv2d.1} parent=5 // pred_region
      %s168 = ssub.s32 %s10, 1
      // Predicated region
      $region13: #{basic_conv2d.1} parent=11 // pred_check
        %p169 = pneg %p74
      $region14: #{basic_conv2d.1} parent=11 // pred_check_branch
        %171 = sbr.rel (%p169) target = $region16
      $region15: #{basic_conv2d.1} parent=11 // pred_region
        %p172 = scmp.lt.s32.totalorder %s20, 0
        %s173 = scalar_select %p172, %s20, 0
        %s174 = smul.addr %s173, 8
        %s175 = scalar_lea.vmem %s1, %s174
      $region16: #{basic_conv2d.1} parent=11 // pred_fallthru
        _
      // Predicated region
      $region17: #{basic_conv2d.1} parent=11 // pred_check
        %p176 = pneg %p100
      $region18: #{basic_conv2d.1} parent=11 // pred_check_branch
        %178 = sbr.rel (%p176) target = $region20
      $region19: #{basic_conv2d.1} parent=11 // pred_region
        %p179 = scmp.lt.s32.totalorder %s20, 0
        %s180 = scalar_select %p179, %s20, 0
        %s181 = scalar_lea.vmem %s2, %s180
      $region20: #{basic_conv2d.1} parent=11 // pred_fallthru
        _
      // Predicated region
      $region21: #{basic_conv2d.1} parent=11 // pred_check
        %p182 = pneg %p126
      $region22: #{basic_conv2d.1} parent=11 // pred_check_branch
        %184 = sbr.rel (%p182) target = $region24
      $region23: #{basic_conv2d.1} parent=11 // pred_region
        %p185 = scmp.lt.s32.totalorder %s20, 0
        %s186 = scalar_select %p185, %s20, 0
        %s187 = scalar_lea.vmem %s3, %s186
      $region24: #{basic_conv2d.1} parent=11 // pred_fallthru
        _
    $region12: #{basic_conv2d.1} parent=5 // pred_fallthru
      _
    %p188 = scmp.lt.s32.totalorder %s10, 2
    // Predicated region
    $region25: #{basic_conv2d.1} parent=5 // pred_check
      %p189 = pneg %p188
    $region26: #{basic_conv2d.1} parent=5 // pred_check_branch
      %191 = sbr.rel (%p189) target = $region28
    $region27: #{basic_conv2d.1} parent=5 // pred_region
      // Predicated region
      $region29: #{basic_conv2d.1} parent=27 // pred_check
        %p192 = pneg %p42
      $region30: #{basic_conv2d.1} parent=27 // pred_check_branch
        %194 = sbr.rel (%p192) target = $region32
      $region31: #{basic_conv2d.1} parent=27 // pred_region
        %p195 = scmp.lt.s32.totalorder %s17, 1
        %s196 = scalar_select %p195, %s17, 1
        %s197 = smul.addr %s196, 54
        %s198 = smul.addr %s197, 8
        %s199 = scalar_lea.vmem %s0, %s198
      $region32: #{basic_conv2d.1} parent=27 // pred_fallthru
        _
    $region28: #{basic_conv2d.1} parent=5 // pred_fallthru
      _
    %p200 = scmp.le.s32.totalorder 1, %s10
    %p201 = scmp.lt.s32.totalorder %s10, 3
    %p202 = pnand %p200, %p201
    %p203 = pneg %p202
    // Predicated region
    $region33: #{basic_conv2d.1} parent=5 // pred_check
      _
    $region34: #{basic_conv2d.1} parent=5 // pred_check_branch
      %205 = sbr.rel (%p202) target = $region36
    $region35: #{basic_conv2d.1} parent=5 // pred_region
      %s206 = ssub.s32 %s10, 1
      %p207 = scmp.lt.s32.totalorder %s19, 1
      %s208 = scalar_select %p207, %s19, 1
      %s209 = smul.addr %s208, 54
      %s210 = smul.addr %s209, 8
      %s211 = scalar_lea.vmem %s0, %s210
      %p212 = pneg %p48
      %p213 = pneg %p45
      %p214 = scmp.lt.s32.totalorder %s20, 0
      %s215 = scalar_select %p214, %s20, 0
      %s216 = smul.addr %s215, 8
      %s217 = scalar_lea.vmem %s1, %s216
      %p218 = pneg %p74
      %p219 = pneg %p71
      %p220 = scmp.lt.s32.totalorder %s20, 0
      %s221 = scalar_select %p220, %s20, 0
      %s222 = scalar_lea.vmem %s2, %s221
      %p223 = pneg %p100
      %p224 = pneg %p97
      %p225 = scmp.lt.s32.totalorder %s20, 0
      %s226 = scalar_select %p225, %s20, 0
      %s227 = scalar_lea.vmem %s3, %s226
      %p228 = pneg %p126
      %p229 = pneg %p123
      %p230 = pneg %p154
      %p231 = pneg %p151
      %s232 = smul.u32 16, %s20
      %p233 = scmp.lt.s32.totalorder %s19, 1
      %s234 = scalar_select %p233, %s19, 1
      %p235 = scmp.lt.s32.totalorder %s232, 15
      %s236 = scalar_select %p235, %s232, 15
      %s237 = smul.addr %s236, 2
      %s238 = smul.addr %s234, 32
      %s239 = sadd.s32 %s237, %s238
      %s240 = smul.addr %s239, 8
      %s241 = scalar_lea.vmem %s4, %s240
      %p242 = scmp.lt.s32.totalorder %s19, 1
      %s243 = scalar_select %p242, %s19, 1
      %s244 = smul.addr %s243, 54
      %s245 = smul.addr %s244, 8
      %s246 = scalar_lea.vmem %s0, %s245
      %p247 = scmp.lt.s32.totalorder %s20, 0
      %s248 = scalar_select %p247, %s20, 0
      %s249 = smul.addr %s248, 8
      %s250 = scalar_lea.vmem %s1, %s249
      %p251 = scmp.lt.s32.totalorder %s20, 0
      %s252 = scalar_select %p251, %s20, 0
      %s253 = scalar_lea.vmem %s2, %s252
      %p254 = scmp.lt.s32.totalorder %s20, 0
      %s255 = scalar_select %p254, %s20, 0
      %s256 = scalar_lea.vmem %s3, %s255
      %s257 = smul.u32 16, %s20
      %p258 = scmp.lt.s32.totalorder %s19, 1
      %s259 = scalar_select %p258, %s19, 1
      %p260 = scmp.lt.s32.totalorder %s257, 15
      %s261 = scalar_select %p260, %s257, 15
      %s262 = smul.addr %s261, 2
      %s263 = smul.addr %s259, 32
      %s264 = sadd.s32 %s262, %s263
      %s265 = smul.addr %s264, 8
      %s266 = scalar_lea.vmem %s4, %s265
      %s267 = smul.u32 16, %s20
      %v268 = vld [vmem:[%s250] sm:$0xff]
      %v269 = vld [vmem:[%s250 + $0x8] sm:$0xff]
      %v270 = vld [vmem:[%s250 + $0x10] sm:$0xff]
      %v271 = vld [vmem:[%s250 + $0x18] sm:$0xff]
      %v272 = vld [vmem:[%s250 + $0x20] sm:$0xf]
      loop: start=0, step=1, limit=2
      $region37: #{basic_conv2d.1} parent=35 // loop_pre_header
        _
      $region38: #{basic_conv2d.1} parent=35 // loop_header
        %s274 = sphi 0, %s278
        %p275 = scmp.ge.s32.totalorder %s274, 2
        %v279 = vphi 0.0, %v1352
        %v280 = vphi 0.0, %v1390
      $region39: #{basic_conv2d.1} parent=35 // loop_header_branch
        %277 = sbr.rel (%p275) target = $region43
      $region40: #{basic_conv2d.1} parent=35 // loop_body
        %s281 = smul.u32 %s274, 8
        %s282 = smul.u32 %s281, 24
        %s283 = scalar_lea.vmem %s246, %s282
        %v284 = vld [vmem:[%s283] sm:$0xff]
        %v285 = vld [vmem:[%s283 + $0x8] sm:$0xff]
        %v286 = vld [vmem:[%s283 + $0x18] sm:$0xff]
        %v287 = vld [vmem:[%s283 + $0x20] sm:$0xff]
        %v288 = vld [vmem:[%s283 + $0x30] sm:$0xff]
        %v289 = vld [vmem:[%s283 + $0x38] sm:$0xff]
        %v290 = vld [vmem:[%s283 + $0x48] sm:$0xff]
        %v291 = vld [vmem:[%s283 + $0x50] sm:$0xff]
        %v292 = vld [vmem:[%s283 + $0x60] sm:$0xff]
        %v293 = vld [vmem:[%s283 + $0x68] sm:$0xff]
        %v294 = vld [vmem:[%s283 + $0x78] sm:$0xff]
        %v295 = vld [vmem:[%s283 + $0x80] sm:$0xff]
        %v296 = vld [vmem:[%s283 + $0x90] sm:$0xff]
        %v297 = vld [vmem:[%s283 + $0x98] sm:$0xff]
        %v298 = vld [vmem:[%s283 + $0xa8] sm:$0xff]
        %v299 = vld [vmem:[%s283 + $0xb0] sm:$0xff]
        %vm300 = vcmask 31744
        %301 = vst.msk [vmem:[#allocation2] sm:$0xff] %vm300, %v284
        %302 = vst.msk [vmem:[#allocation2 + $0x8] sm:$0xff] %vm300, %v285
        %303 = vst.msk [vmem:[#allocation2 + $0x10] sm:$0xff] %vm300, %v286
        %304 = vst.msk [vmem:[#allocation2 + $0x18] sm:$0xff] %vm300, %v287
        %305 = vst.msk [vmem:[#allocation2 + $0x20] sm:$0xff] %vm300, %v288
        %306 = vst.msk [vmem:[#allocation2 + $0x28] sm:$0xff] %vm300, %v289
        %307 = vst.msk [vmem:[#allocation2 + $0x30] sm:$0xff] %vm300, %v290
        %308 = vst.msk [vmem:[#allocation2 + $0x38] sm:$0xff] %vm300, %v291
        %309 = vst.msk [vmem:[#allocation2 + $0x40] sm:$0xff] %vm300, %v292
        %310 = vst.msk [vmem:[#allocation2 + $0x48] sm:$0xff] %vm300, %v293
        %311 = vst.msk [vmem:[#allocation2 + $0x50] sm:$0xff] %vm300, %v294
        %312 = vst.msk [vmem:[#allocation2 + $0x58] sm:$0xff] %vm300, %v295
        %313 = vst.msk [vmem:[#allocation2 + $0x60] sm:$0xff] %vm300, %v296
        %314 = vst.msk [vmem:[#allocation2 + $0x68] sm:$0xff] %vm300, %v297
        %315 = vst.msk [vmem:[#allocation2 + $0x70] sm:$0xff] %vm300, %v298
        %316 = vst.msk [vmem:[#allocation2 + $0x78] sm:$0xff] %vm300, %v299
        %v317 = vld [vmem:[%s283 + $0x1] sm:$0xff]
        %v318 = vld [vmem:[%s283 + $0x9] sm:$0xff]
        %v319 = vld [vmem:[%s283 + $0x19] sm:$0xff]
        %v320 = vld [vmem:[%s283 + $0x21] sm:$0xff]
        %v321 = vld [vmem:[%s283 + $0x31] sm:$0xff]
        %v322 = vld [vmem:[%s283 + $0x39] sm:$0xff]
        %v323 = vld [vmem:[%s283 + $0x49] sm:$0xff]
        %v324 = vld [vmem:[%s283 + $0x51] sm:$0xff]
        %v325 = vld [vmem:[%s283 + $0x61] sm:$0xff]
        %v326 = vld [vmem:[%s283 + $0x69] sm:$0xff]
        %v327 = vld [vmem:[%s283 + $0x79] sm:$0xff]
        %v328 = vld [vmem:[%s283 + $0x81] sm:$0xff]
        %v329 = vld [vmem:[%s283 + $0x91] sm:$0xff]
        %v330 = vld [vmem:[%s283 + $0x99] sm:$0xff]
        %v331 = vld [vmem:[%s283 + $0xa9] sm:$0xff]
        %v332 = vld [vmem:[%s283 + $0xb1] sm:$0xff]
        %349 = vrot.lane.b32.xlu0 %v317, 4
        %v350 = vpop.permute.xlu0 %349
        %351 = vrot.lane.b32.xlu0 %v318, 4
        %v352 = vpop.permute.xlu0 %351
        %353 = vrot.lane.b32.xlu0 %v319, 4
        %v354 = vpop.permute.xlu0 %353
        %355 = vrot.lane.b32.xlu0 %v320, 4
        %v356 = vpop.permute.xlu0 %355
        %357 = vrot.lane.b32.xlu0 %v321, 4
        %v358 = vpop.permute.xlu0 %357
        %359 = vrot.lane.b32.xlu0 %v322, 4
        %v360 = vpop.permute.xlu0 %359
        %361 = vrot.lane.b32.xlu0 %v323, 4
        %v362 = vpop.permute.xlu0 %361
        %363 = vrot.lane.b32.xlu0 %v324, 4
        %v364 = vpop.permute.xlu0 %363
        %365 = vrot.lane.b32.xlu0 %v325, 4
        %v366 = vpop.permute.xlu0 %365
        %367 = vrot.lane.b32.xlu0 %v326, 4
        %v368 = vpop.permute.xlu0 %367
        %369 = vrot.lane.b32.xlu0 %v327, 4
        %v370 = vpop.permute.xlu0 %369
        %371 = vrot.lane.b32.xlu0 %v328, 4
        %v372 = vpop.permute.xlu0 %371
        %373 = vrot.lane.b32.xlu0 %v329, 4
        %v374 = vpop.permute.xlu0 %373
        %375 = vrot.lane.b32.xlu0 %v330, 4
        %v376 = vpop.permute.xlu0 %375
        %377 = vrot.lane.b32.xlu0 %v331, 4
        %v378 = vpop.permute.xlu0 %377
        %379 = vrot.lane.b32.xlu0 %v332, 4
        %v380 = vpop.permute.xlu0 %379
        %vm397 = vcmask 64544
        %398 = vst.msk [vmem:[#allocation2] sm:$0xff] %vm397, %v350
        %399 = vst.msk [vmem:[#allocation2 + $0x8] sm:$0xff] %vm397, %v352
        %400 = vst.msk [vmem:[#allocation2 + $0x10] sm:$0xff] %vm397, %v354
        %401 = vst.msk [vmem:[#allocation2 + $0x18] sm:$0xff] %vm397, %v356
        %402 = vst.msk [vmem:[#allocation2 + $0x20] sm:$0xff] %vm397, %v358
        %403 = vst.msk [vmem:[#allocation2 + $0x28] sm:$0xff] %vm397, %v360
        %404 = vst.msk [vmem:[#allocation2 + $0x30] sm:$0xff] %vm397, %v362
        %405 = vst.msk [vmem:[#allocation2 + $0x38] sm:$0xff] %vm397, %v364
        %406 = vst.msk [vmem:[#allocation2 + $0x40] sm:$0xff] %vm397, %v366
        %407 = vst.msk [vmem:[#allocation2 + $0x48] sm:$0xff] %vm397, %v368
        %408 = vst.msk [vmem:[#allocation2 + $0x50] sm:$0xff] %vm397, %v370
        %409 = vst.msk [vmem:[#allocation2 + $0x58] sm:$0xff] %vm397, %v372
        %410 = vst.msk [vmem:[#allocation2 + $0x60] sm:$0xff] %vm397, %v374
        %411 = vst.msk [vmem:[#allocation2 + $0x68] sm:$0xff] %vm397, %v376
        %412 = vst.msk [vmem:[#allocation2 + $0x70] sm:$0xff] %vm397, %v378
        %413 = vst.msk [vmem:[#allocation2 + $0x78] sm:$0xff] %vm397, %v380
        %v414 = vld [vmem:[%s283 + $0x2] sm:$0xff]
        %v415 = vld [vmem:[%s283 + $0xa] sm:$0xff]
        %v416 = vld [vmem:[%s283 + $0x1a] sm:$0xff]
        %v417 = vld [vmem:[%s283 + $0x22] sm:$0xff]
        %v418 = vld [vmem:[%s283 + $0x32] sm:$0xff]
        %v419 = vld [vmem:[%s283 + $0x3a] sm:$0xff]
        %v420 = vld [vmem:[%s283 + $0x4a] sm:$0xff]
        %v421 = vld [vmem:[%s283 + $0x52] sm:$0xff]
        %v422 = vld [vmem:[%s283 + $0x62] sm:$0xff]
        %v423 = vld [vmem:[%s283 + $0x6a] sm:$0xff]
        %v424 = vld [vmem:[%s283 + $0x7a] sm:$0xff]
        %v425 = vld [vmem:[%s283 + $0x82] sm:$0xff]
        %v426 = vld [vmem:[%s283 + $0x92] sm:$0xff]
        %v427 = vld [vmem:[%s283 + $0x9a] sm:$0xff]
        %v428 = vld [vmem:[%s283 + $0xaa] sm:$0xff]
        %v429 = vld [vmem:[%s283 + $0xb2] sm:$0xff]
        %446 = vrot.lane.b32.xlu0 %v414, 8
        %v447 = vpop.permute.xlu0 %446
        %448 = vrot.lane.b32.xlu0 %v415, 8
        %v449 = vpop.permute.xlu0 %448
        %450 = vrot.lane.b32.xlu0 %v416, 8
        %v451 = vpop.permute.xlu0 %450
        %452 = vrot.lane.b32.xlu0 %v417, 8
        %v453 = vpop.permute.xlu0 %452
        %454 = vrot.lane.b32.xlu0 %v418, 8
        %v455 = vpop.permute.xlu0 %454
        %456 = vrot.lane.b32.xlu0 %v419, 8
        %v457 = vpop.permute.xlu0 %456
        %458 = vrot.lane.b32.xlu0 %v420, 8
        %v459 = vpop.permute.xlu0 %458
        %460 = vrot.lane.b32.xlu0 %v421, 8
        %v461 = vpop.permute.xlu0 %460
        %462 = vrot.lane.b32.xlu0 %v422, 8
        %v463 = vpop.permute.xlu0 %462
        %464 = vrot.lane.b32.xlu0 %v423, 8
        %v465 = vpop.permute.xlu0 %464
        %466 = vrot.lane.b32.xlu0 %v424, 8
        %v467 = vpop.permute.xlu0 %466
        %468 = vrot.lane.b32.xlu0 %v425, 8
        %v469 = vpop.permute.xlu0 %468
        %470 = vrot.lane.b32.xlu0 %v426, 8
        %v471 = vpop.permute.xlu0 %470
        %472 = vrot.lane.b32.xlu0 %v427, 8
        %v473 = vpop.permute.xlu0 %472
        %474 = vrot.lane.b32.xlu0 %v428, 8
        %v475 = vpop.permute.xlu0 %474
        %476 = vrot.lane.b32.xlu0 %v429, 8
        %v477 = vpop.permute.xlu0 %476
        %vm494 = vcmask 97344
        %495 = vst.msk [vmem:[#allocation2] sm:$0xff] %vm494, %v447
        %496 = vst.msk [vmem:[#allocation2 + $0x8] sm:$0xff] %vm494, %v449
        %497 = vst.msk [vmem:[#allocation2 + $0x10] sm:$0xff] %vm494, %v451
        %498 = vst.msk [vmem:[#allocation2 + $0x18] sm:$0xff] %vm494, %v453
        %499 = vst.msk [vmem:[#allocation2 + $0x20] sm:$0xff] %vm494, %v455
        %500 = vst.msk [vmem:[#allocation2 + $0x28] sm:$0xff] %vm494, %v457
        %501 = vst.msk [vmem:[#allocation2 + $0x30] sm:$0xff] %vm494, %v459
        %502 = vst.msk [vmem:[#allocation2 + $0x38] sm:$0xff] %vm494, %v461
        %503 = vst.msk [vmem:[#allocation2 + $0x40] sm:$0xff] %vm494, %v463
        %504 = vst.msk [vmem:[#allocation2 + $0x48] sm:$0xff] %vm494, %v465
        %505 = vst.msk [vmem:[#allocation2 + $0x50] sm:$0xff] %vm494, %v467
        %506 = vst.msk [vmem:[#allocation2 + $0x58] sm:$0xff] %vm494, %v469
        %507 = vst.msk [vmem:[#allocation2 + $0x60] sm:$0xff] %vm494, %v471
        %508 = vst.msk [vmem:[#allocation2 + $0x68] sm:$0xff] %vm494, %v473
        %509 = vst.msk [vmem:[#allocation2 + $0x70] sm:$0xff] %vm494, %v475
        %510 = vst.msk [vmem:[#allocation2 + $0x78] sm:$0xff] %vm494, %v477
        %s511 = sadd.s32 %s281, 1
        %s512 = smul.u32 %s511, 24
        %s513 = scalar_lea.vmem %s246, %s512
        %v514 = vld [vmem:[%s513] sm:$0xff]
        %v515 = vld [vmem:[%s513 + $0x8] sm:$0xff]
        %v516 = vld [vmem:[%s513 + $0x18] sm:$0xff]
        %v517 = vld [vmem:[%s513 + $0x20] sm:$0xff]
        %v518 = vld [vmem:[%s513 + $0x30] sm:$0xff]
        %v519 = vld [vmem:[%s513 + $0x38] sm:$0xff]
        %v520 = vld [vmem:[%s513 + $0x48] sm:$0xff]
        %v521 = vld [vmem:[%s513 + $0x50] sm:$0xff]
        %v522 = vld [vmem:[%s513 + $0x60] sm:$0xff]
        %v523 = vld [vmem:[%s513 + $0x68] sm:$0xff]
        %v524 = vld [vmem:[%s513 + $0x78] sm:$0xff]
        %v525 = vld [vmem:[%s513 + $0x80] sm:$0xff]
        %v526 = vld [vmem:[%s513 + $0x90] sm:$0xff]
        %v527 = vld [vmem:[%s513 + $0x98] sm:$0xff]
        %v528 = vld [vmem:[%s513 + $0xa8] sm:$0xff]
        %v529 = vld [vmem:[%s513 + $0xb0] sm:$0xff]
        %546 = vrot.lane.b32.xlu0 %v514, 12
        %v547 = vpop.permute.xlu0 %546
        %548 = vrot.lane.b32.xlu0 %v515, 12
        %v549 = vpop.permute.xlu0 %548
        %550 = vrot.lane.b32.xlu0 %v516, 12
        %v551 = vpop.permute.xlu0 %550
        %552 = vrot.lane.b32.xlu0 %v517, 12
        %v553 = vpop.permute.xlu0 %552
        %554 = vrot.lane.b32.xlu0 %v518, 12
        %v555 = vpop.permute.xlu0 %554
        %556 = vrot.lane.b32.xlu0 %v519, 12
        %v557 = vpop.permute.xlu0 %556
        %558 = vrot.lane.b32.xlu0 %v520, 12
        %v559 = vpop.permute.xlu0 %558
        %560 = vrot.lane.b32.xlu0 %v521, 12
        %v561 = vpop.permute.xlu0 %560
        %562 = vrot.lane.b32.xlu0 %v522, 12
        %v563 = vpop.permute.xlu0 %562
        %564 = vrot.lane.b32.xlu0 %v523, 12
        %v565 = vpop.permute.xlu0 %564
        %566 = vrot.lane.b32.xlu0 %v524, 12
        %v567 = vpop.permute.xlu0 %566
        %568 = vrot.lane.b32.xlu0 %v525, 12
        %v569 = vpop.permute.xlu0 %568
        %570 = vrot.lane.b32.xlu0 %v526, 12
        %v571 = vpop.permute.xlu0 %570
        %572 = vrot.lane.b32.xlu0 %v527, 12
        %v573 = vpop.permute.xlu0 %572
        %574 = vrot.lane.b32.xlu0 %v528, 12
        %v575 = vpop.permute.xlu0 %574
        %576 = vrot.lane.b32.xlu0 %v529, 12
        %v577 = vpop.permute.xlu0 %576
        %vm594 = vcmask 130144
        %595 = vst.msk [vmem:[#allocation2] sm:$0xff] %vm594, %v547
        %596 = vst.msk [vmem:[#allocation2 + $0x8] sm:$0xff] %vm594, %v549
        %597 = vst.msk [vmem:[#allocation2 + $0x10] sm:$0xff] %vm594, %v551
        %598 = vst.msk [vmem:[#allocation2 + $0x18] sm:$0xff] %vm594, %v553
        %599 = vst.msk [vmem:[#allocation2 + $0x20] sm:$0xff] %vm594, %v555
        %600 = vst.msk [vmem:[#allocation2 + $0x28] sm:$0xff] %vm594, %v557
        %601 = vst.msk [vmem:[#allocation2 + $0x30] sm:$0xff] %vm594, %v559
        %602 = vst.msk [vmem:[#allocation2 + $0x38] sm:$0xff] %vm594, %v561
        %603 = vst.msk [vmem:[#allocation2 + $0x40] sm:$0xff] %vm594, %v563
        %604 = vst.msk [vmem:[#allocation2 + $0x48] sm:$0xff] %vm594, %v565
        %605 = vst.msk [vmem:[#allocation2 + $0x50] sm:$0xff] %vm594, %v567
        %606 = vst.msk [vmem:[#allocation2 + $0x58] sm:$0xff] %vm594, %v569
        %607 = vst.msk [vmem:[#allocation2 + $0x60] sm:$0xff] %vm594, %v571
        %608 = vst.msk [vmem:[#allocation2 + $0x68] sm:$0xff] %vm594, %v573
        %609 = vst.msk [vmem:[#allocation2 + $0x70] sm:$0xff] %vm594, %v575
        %610 = vst.msk [vmem:[#allocation2 + $0x78] sm:$0xff] %vm594, %v577
        %v611 = vld [vmem:[%s513 + $0x1] sm:$0xff]
        %v612 = vld [vmem:[%s513 + $0x9] sm:$0xff]
        %v613 = vld [vmem:[%s513 + $0x19] sm:$0xff]
        %v614 = vld [vmem:[%s513 + $0x21] sm:$0xff]
        %v615 = vld [vmem:[%s513 + $0x31] sm:$0xff]
        %v616 = vld [vmem:[%s513 + $0x39] sm:$0xff]
        %v617 = vld [vmem:[%s513 + $0x49] sm:$0xff]
        %v618 = vld [vmem:[%s513 + $0x51] sm:$0xff]
        %v619 = vld [vmem:[%s513 + $0x61] sm:$0xff]
        %v620 = vld [vmem:[%s513 + $0x69] sm:$0xff]
        %v621 = vld [vmem:[%s513 + $0x79] sm:$0xff]
        %v622 = vld [vmem:[%s513 + $0x81] sm:$0xff]
        %v623 = vld [vmem:[%s513 + $0x91] sm:$0xff]
        %v624 = vld [vmem:[%s513 + $0x99] sm:$0xff]
        %v625 = vld [vmem:[%s513 + $0xa9] sm:$0xff]
        %v626 = vld [vmem:[%s513 + $0xb1] sm:$0xff]
        %643 = vrot.lane.b32.xlu0 %v611, 16
        %v644 = vpop.permute.xlu0 %643
        %645 = vrot.lane.b32.xlu0 %v612, 16
        %v646 = vpop.permute.xlu0 %645
        %647 = vrot.lane.b32.xlu0 %v613, 16
        %v648 = vpop.permute.xlu0 %647
        %649 = vrot.lane.b32.xlu0 %v614, 16
        %v650 = vpop.permute.xlu0 %649
        %651 = vrot.lane.b32.xlu0 %v615, 16
        %v652 = vpop.permute.xlu0 %651
        %653 = vrot.lane.b32.xlu0 %v616, 16
        %v654 = vpop.permute.xlu0 %653
        %655 = vrot.lane.b32.xlu0 %v617, 16
        %v656 = vpop.permute.xlu0 %655
        %657 = vrot.lane.b32.xlu0 %v618, 16
        %v658 = vpop.permute.xlu0 %657
        %659 = vrot.lane.b32.xlu0 %v619, 16
        %v660 = vpop.permute.xlu0 %659
        %661 = vrot.lane.b32.xlu0 %v620, 16
        %v662 = vpop.permute.xlu0 %661
        %663 = vrot.lane.b32.xlu0 %v621, 16
        %v664 = vpop.permute.xlu0 %663
        %665 = vrot.lane.b32.xlu0 %v622, 16
        %v666 = vpop.permute.xlu0 %665
        %667 = vrot.lane.b32.xlu0 %v623, 16
        %v668 = vpop.permute.xlu0 %667
        %669 = vrot.lane.b32.xlu0 %v624, 16
        %v670 = vpop.permute.xlu0 %669
        %671 = vrot.lane.b32.xlu0 %v625, 16
        %v672 = vpop.permute.xlu0 %671
        %673 = vrot.lane.b32.xlu0 %v626, 16
        %v674 = vpop.permute.xlu0 %673
        %vm691 = vcmask 162944
        %692 = vst.msk [vmem:[#allocation2] sm:$0xff] %vm691, %v644
        %693 = vst.msk [vmem:[#allocation2 + $0x8] sm:$0xff] %vm691, %v646
        %694 = vst.msk [vmem:[#allocation2 + $0x10] sm:$0xff] %vm691, %v648
        %695 = vst.msk [vmem:[#allocation2 + $0x18] sm:$0xff] %vm691, %v650
        %696 = vst.msk [vmem:[#allocation2 + $0x20] sm:$0xff] %vm691, %v652
        %697 = vst.msk [vmem:[#allocation2 + $0x28] sm:$0xff] %vm691, %v654
        %698 = vst.msk [vmem:[#allocation2 + $0x30] sm:$0xff] %vm691, %v656
        %699 = vst.msk [vmem:[#allocation2 + $0x38] sm:$0xff] %vm691, %v658
        %700 = vst.msk [vmem:[#allocation2 + $0x40] sm:$0xff] %vm691, %v660
        %701 = vst.msk [vmem:[#allocation2 + $0x48] sm:$0xff] %vm691, %v662
        %702 = vst.msk [vmem:[#allocation2 + $0x50] sm:$0xff] %vm691, %v664
        %703 = vst.msk [vmem:[#allocation2 + $0x58] sm:$0xff] %vm691, %v666
        %704 = vst.msk [vmem:[#allocation2 + $0x60] sm:$0xff] %vm691, %v668
        %705 = vst.msk [vmem:[#allocation2 + $0x68] sm:$0xff] %vm691, %v670
        %706 = vst.msk [vmem:[#allocation2 + $0x70] sm:$0xff] %vm691, %v672
        %707 = vst.msk [vmem:[#allocation2 + $0x78] sm:$0xff] %vm691, %v674
        %v708 = vld [vmem:[%s513 + $0x2] sm:$0xff]
        %v709 = vld [vmem:[%s513 + $0xa] sm:$0xff]
        %v710 = vld [vmem:[%s513 + $0x1a] sm:$0xff]
        %v711 = vld [vmem:[%s513 + $0x22] sm:$0xff]
        %v712 = vld [vmem:[%s513 + $0x32] sm:$0xff]
        %v713 = vld [vmem:[%s513 + $0x3a] sm:$0xff]
        %v714 = vld [vmem:[%s513 + $0x4a] sm:$0xff]
        %v715 = vld [vmem:[%s513 + $0x52] sm:$0xff]
        %v716 = vld [vmem:[%s513 + $0x62] sm:$0xff]
        %v717 = vld [vmem:[%s513 + $0x6a] sm:$0xff]
        %v718 = vld [vmem:[%s513 + $0x7a] sm:$0xff]
        %v719 = vld [vmem:[%s513 + $0x82] sm:$0xff]
        %v720 = vld [vmem:[%s513 + $0x92] sm:$0xff]
        %v721 = vld [vmem:[%s513 + $0x9a] sm:$0xff]
        %v722 = vld [vmem:[%s513 + $0xaa] sm:$0xff]
        %v723 = vld [vmem:[%s513 + $0xb2] sm:$0xff]
        %740 = vrot.lane.b32.xlu0 %v708, 20
        %v741 = vpop.permute.xlu0 %740
        %742 = vrot.lane.b32.xlu0 %v709, 20
        %v743 = vpop.permute.xlu0 %742
        %744 = vrot.lane.b32.xlu0 %v710, 20
        %v745 = vpop.permute.xlu0 %744
        %746 = vrot.lane.b32.xlu0 %v711, 20
        %v747 = vpop.permute.xlu0 %746
        %748 = vrot.lane.b32.xlu0 %v712, 20
        %v749 = vpop.permute.xlu0 %748
        %750 = vrot.lane.b32.xlu0 %v713, 20
        %v751 = vpop.permute.xlu0 %750
        %752 = vrot.lane.b32.xlu0 %v714, 20
        %v753 = vpop.permute.xlu0 %752
        %754 = vrot.lane.b32.xlu0 %v715, 20
        %v755 = vpop.permute.xlu0 %754
        %756 = vrot.lane.b32.xlu0 %v716, 20
        %v757 = vpop.permute.xlu0 %756
        %758 = vrot.lane.b32.xlu0 %v717, 20
        %v759 = vpop.permute.xlu0 %758
        %760 = vrot.lane.b32.xlu0 %v718, 20
        %v761 = vpop.permute.xlu0 %760
        %762 = vrot.lane.b32.xlu0 %v719, 20
        %v763 = vpop.permute.xlu0 %762
        %764 = vrot.lane.b32.xlu0 %v720, 20
        %v765 = vpop.permute.xlu0 %764
        %766 = vrot.lane.b32.xlu0 %v721, 20
        %v767 = vpop.permute.xlu0 %766
        %768 = vrot.lane.b32.xlu0 %v722, 20
        %v769 = vpop.permute.xlu0 %768
        %770 = vrot.lane.b32.xlu0 %v723, 20
        %v771 = vpop.permute.xlu0 %770
        %vm788 = vcmask 195744
        %789 = vst.msk [vmem:[#allocation2] sm:$0xff] %vm788, %v741
        %790 = vst.msk [vmem:[#allocation2 + $0x8] sm:$0xff] %vm788, %v743
        %791 = vst.msk [vmem:[#allocation2 + $0x10] sm:$0xff] %vm788, %v745
        %792 = vst.msk [vmem:[#allocation2 + $0x18] sm:$0xff] %vm788, %v747
        %793 = vst.msk [vmem:[#allocation2 + $0x20] sm:$0xff] %vm788, %v749
        %794 = vst.msk [vmem:[#allocation2 + $0x28] sm:$0xff] %vm788, %v751
        %795 = vst.msk [vmem:[#allocation2 + $0x30] sm:$0xff] %vm788, %v753
        %796 = vst.msk [vmem:[#allocation2 + $0x38] sm:$0xff] %vm788, %v755
        %797 = vst.msk [vmem:[#allocation2 + $0x40] sm:$0xff] %vm788, %v757
        %798 = vst.msk [vmem:[#allocation2 + $0x48] sm:$0xff] %vm788, %v759
        %799 = vst.msk [vmem:[#allocation2 + $0x50] sm:$0xff] %vm788, %v761
        %800 = vst.msk [vmem:[#allocation2 + $0x58] sm:$0xff] %vm788, %v763
        %801 = vst.msk [vmem:[#allocation2 + $0x60] sm:$0xff] %vm788, %v765
        %802 = vst.msk [vmem:[#allocation2 + $0x68] sm:$0xff] %vm788, %v767
        %803 = vst.msk [vmem:[#allocation2 + $0x70] sm:$0xff] %vm788, %v769
        %804 = vst.msk [vmem:[#allocation2 + $0x78] sm:$0xff] %vm788, %v771
        %s805 = sadd.s32 %s281, 2
        %s806 = smul.u32 %s805, 24
        %s807 = scalar_lea.vmem %s246, %s806
        %v808 = vld [vmem:[%s807] sm:$0xff]
        %v809 = vld [vmem:[%s807 + $0x8] sm:$0xff]
        %v810 = vld [vmem:[%s807 + $0x18] sm:$0xff]
        %v811 = vld [vmem:[%s807 + $0x20] sm:$0xff]
        %v812 = vld [vmem:[%s807 + $0x30] sm:$0xff]
        %v813 = vld [vmem:[%s807 + $0x38] sm:$0xff]
        %v814 = vld [vmem:[%s807 + $0x48] sm:$0xff]
        %v815 = vld [vmem:[%s807 + $0x50] sm:$0xff]
        %v816 = vld [vmem:[%s807 + $0x60] sm:$0xff]
        %v817 = vld [vmem:[%s807 + $0x68] sm:$0xff]
        %v818 = vld [vmem:[%s807 + $0x78] sm:$0xff]
        %v819 = vld [vmem:[%s807 + $0x80] sm:$0xff]
        %v820 = vld [vmem:[%s807 + $0x90] sm:$0xff]
        %v821 = vld [vmem:[%s807 + $0x98] sm:$0xff]
        %v822 = vld [vmem:[%s807 + $0xa8] sm:$0xff]
        %v823 = vld [vmem:[%s807 + $0xb0] sm:$0xff]
        %840 = vrot.lane.b32.xlu0 %v808, 24
        %v841 = vpop.permute.xlu0 %840
        %842 = vrot.lane.b32.xlu0 %v809, 24
        %v843 = vpop.permute.xlu0 %842
        %844 = vrot.lane.b32.xlu0 %v810, 24
        %v845 = vpop.permute.xlu0 %844
        %846 = vrot.lane.b32.xlu0 %v811, 24
        %v847 = vpop.permute.xlu0 %846
        %848 = vrot.lane.b32.xlu0 %v812, 24
        %v849 = vpop.permute.xlu0 %848
        %850 = vrot.lane.b32.xlu0 %v813, 24
        %v851 = vpop.permute.xlu0 %850
        %852 = vrot.lane.b32.xlu0 %v814, 24
        %v853 = vpop.permute.xlu0 %852
        %854 = vrot.lane.b32.xlu0 %v815, 24
        %v855 = vpop.permute.xlu0 %854
        %856 = vrot.lane.b32.xlu0 %v816, 24
        %v857 = vpop.permute.xlu0 %856
        %858 = vrot.lane.b32.xlu0 %v817, 24
        %v859 = vpop.permute.xlu0 %858
        %860 = vrot.lane.b32.xlu0 %v818, 24
        %v861 = vpop.permute.xlu0 %860
        %862 = vrot.lane.b32.xlu0 %v819, 24
        %v863 = vpop.permute.xlu0 %862
        %864 = vrot.lane.b32.xlu0 %v820, 24
        %v865 = vpop.permute.xlu0 %864
        %866 = vrot.lane.b32.xlu0 %v821, 24
        %v867 = vpop.permute.xlu0 %866
        %868 = vrot.lane.b32.xlu0 %v822, 24
        %v869 = vpop.permute.xlu0 %868
        %870 = vrot.lane.b32.xlu0 %v823, 24
        %v871 = vpop.permute.xlu0 %870
        %vm888 = vcmask 228544
        %889 = vst.msk [vmem:[#allocation2] sm:$0xff] %vm888, %v841
        %890 = vst.msk [vmem:[#allocation2 + $0x8] sm:$0xff] %vm888, %v843
        %891 = vst.msk [vmem:[#allocation2 + $0x10] sm:$0xff] %vm888, %v845
        %892 = vst.msk [vmem:[#allocation2 + $0x18] sm:$0xff] %vm888, %v847
        %893 = vst.msk [vmem:[#allocation2 + $0x20] sm:$0xff] %vm888, %v849
        %894 = vst.msk [vmem:[#allocation2 + $0x28] sm:$0xff] %vm888, %v851
        %895 = vst.msk [vmem:[#allocation2 + $0x30] sm:$0xff] %vm888, %v853
        %896 = vst.msk [vmem:[#allocation2 + $0x38] sm:$0xff] %vm888, %v855
        %897 = vst.msk [vmem:[#allocation2 + $0x40] sm:$0xff] %vm888, %v857
        %898 = vst.msk [vmem:[#allocation2 + $0x48] sm:$0xff] %vm888, %v859
        %899 = vst.msk [vmem:[#allocation2 + $0x50] sm:$0xff] %vm888, %v861
        %900 = vst.msk [vmem:[#allocation2 + $0x58] sm:$0xff] %vm888, %v863
        %901 = vst.msk [vmem:[#allocation2 + $0x60] sm:$0xff] %vm888, %v865
        %902 = vst.msk [vmem:[#allocation2 + $0x68] sm:$0xff] %vm888, %v867
        %903 = vst.msk [vmem:[#allocation2 + $0x70] sm:$0xff] %vm888, %v869
        %904 = vst.msk [vmem:[#allocation2 + $0x78] sm:$0xff] %vm888, %v871
        %v905 = vld [vmem:[%s807 + $0x1] sm:$0xff]
        %v906 = vld [vmem:[%s807 + $0x9] sm:$0xff]
        %v907 = vld [vmem:[%s807 + $0x19] sm:$0xff]
        %v908 = vld [vmem:[%s807 + $0x21] sm:$0xff]
        %v909 = vld [vmem:[%s807 + $0x31] sm:$0xff]
        %v910 = vld [vmem:[%s807 + $0x39] sm:$0xff]
        %v911 = vld [vmem:[%s807 + $0x49] sm:$0xff]
        %v912 = vld [vmem:[%s807 + $0x51] sm:$0xff]
        %v913 = vld [vmem:[%s807 + $0x61] sm:$0xff]
        %v914 = vld [vmem:[%s807 + $0x69] sm:$0xff]
        %v915 = vld [vmem:[%s807 + $0x79] sm:$0xff]
        %v916 = vld [vmem:[%s807 + $0x81] sm:$0xff]
        %v917 = vld [vmem:[%s807 + $0x91] sm:$0xff]
        %v918 = vld [vmem:[%s807 + $0x99] sm:$0xff]
        %v919 = vld [vmem:[%s807 + $0xa9] sm:$0xff]
        %v920 = vld [vmem:[%s807 + $0xb1] sm:$0xff]
        %937 = vrot.lane.b32.xlu0 %v905, 28
        %v938 = vpop.permute.xlu0 %937
        %939 = vrot.lane.b32.xlu0 %v906, 28
        %v940 = vpop.permute.xlu0 %939
        %941 = vrot.lane.b32.xlu0 %v907, 28
        %v942 = vpop.permute.xlu0 %941
        %943 = vrot.lane.b32.xlu0 %v908, 28
        %v944 = vpop.permute.xlu0 %943
        %945 = vrot.lane.b32.xlu0 %v909, 28
        %v946 = vpop.permute.xlu0 %945
        %947 = vrot.lane.b32.xlu0 %v910, 28
        %v948 = vpop.permute.xlu0 %947
        %949 = vrot.lane.b32.xlu0 %v911, 28
        %v950 = vpop.permute.xlu0 %949
        %951 = vrot.lane.b32.xlu0 %v912, 28
        %v952 = vpop.permute.xlu0 %951
        %953 = vrot.lane.b32.xlu0 %v913, 28
        %v954 = vpop.permute.xlu0 %953
        %955 = vrot.lane.b32.xlu0 %v914, 28
        %v956 = vpop.permute.xlu0 %955
        %957 = vrot.lane.b32.xlu0 %v915, 28
        %v958 = vpop.permute.xlu0 %957
        %959 = vrot.lane.b32.xlu0 %v916, 28
        %v960 = vpop.permute.xlu0 %959
        %961 = vrot.lane.b32.xlu0 %v917, 28
        %v962 = vpop.permute.xlu0 %961
        %963 = vrot.lane.b32.xlu0 %v918, 28
        %v964 = vpop.permute.xlu0 %963
        %965 = vrot.lane.b32.xlu0 %v919, 28
        %v966 = vpop.permute.xlu0 %965
        %967 = vrot.lane.b32.xlu0 %v920, 28
        %v968 = vpop.permute.xlu0 %967
        %vm985 = vcmask 261344
        %986 = vst.msk [vmem:[#allocation2] sm:$0xff] %vm985, %v938
        %987 = vst.msk [vmem:[#allocation2 + $0x8] sm:$0xff] %vm985, %v940
        %988 = vst.msk [vmem:[#allocation2 + $0x10] sm:$0xff] %vm985, %v942
        %989 = vst.msk [vmem:[#allocation2 + $0x18] sm:$0xff] %vm985, %v944
        %990 = vst.msk [vmem:[#allocation2 + $0x20] sm:$0xff] %vm985, %v946
        %991 = vst.msk [vmem:[#allocation2 + $0x28] sm:$0xff] %vm985, %v948
        %992 = vst.msk [vmem:[#allocation2 + $0x30] sm:$0xff] %vm985, %v950
        %993 = vst.msk [vmem:[#allocation2 + $0x38] sm:$0xff] %vm985, %v952
        %994 = vst.msk [vmem:[#allocation2 + $0x40] sm:$0xff] %vm985, %v954
        %995 = vst.msk [vmem:[#allocation2 + $0x48] sm:$0xff] %vm985, %v956
        %996 = vst.msk [vmem:[#allocation2 + $0x50] sm:$0xff] %vm985, %v958
        %997 = vst.msk [vmem:[#allocation2 + $0x58] sm:$0xff] %vm985, %v960
        %998 = vst.msk [vmem:[#allocation2 + $0x60] sm:$0xff] %vm985, %v962
        %999 = vst.msk [vmem:[#allocation2 + $0x68] sm:$0xff] %vm985, %v964
        %1000 = vst.msk [vmem:[#allocation2 + $0x70] sm:$0xff] %vm985, %v966
        %1001 = vst.msk [vmem:[#allocation2 + $0x78] sm:$0xff] %vm985, %v968
        %v1002 = vld [vmem:[%s807 + $0x2] sm:$0xff]
        %v1003 = vld [vmem:[%s807 + $0xa] sm:$0xff]
        %v1004 = vld [vmem:[%s807 + $0x1a] sm:$0xff]
        %v1005 = vld [vmem:[%s807 + $0x22] sm:$0xff]
        %v1006 = vld [vmem:[%s807 + $0x32] sm:$0xff]
        %v1007 = vld [vmem:[%s807 + $0x3a] sm:$0xff]
        %v1008 = vld [vmem:[%s807 + $0x4a] sm:$0xff]
        %v1009 = vld [vmem:[%s807 + $0x52] sm:$0xff]
        %v1010 = vld [vmem:[%s807 + $0x62] sm:$0xff]
        %v1011 = vld [vmem:[%s807 + $0x6a] sm:$0xff]
        %v1012 = vld [vmem:[%s807 + $0x7a] sm:$0xff]
        %v1013 = vld [vmem:[%s807 + $0x82] sm:$0xff]
        %v1014 = vld [vmem:[%s807 + $0x92] sm:$0xff]
        %v1015 = vld [vmem:[%s807 + $0x9a] sm:$0xff]
        %v1016 = vld [vmem:[%s807 + $0xaa] sm:$0xff]
        %v1017 = vld [vmem:[%s807 + $0xb2] sm:$0xff]
        %1034 = vrot.lane.b32.xlu0 %v1002, 32
        %v1035 = vpop.permute.xlu0 %1034
        %1036 = vrot.lane.b32.xlu0 %v1003, 32
        %v1037 = vpop.permute.xlu0 %1036
        %1038 = vrot.lane.b32.xlu0 %v1004, 32
        %v1039 = vpop.permute.xlu0 %1038
        %1040 = vrot.lane.b32.xlu0 %v1005, 32
        %v1041 = vpop.permute.xlu0 %1040
        %1042 = vrot.lane.b32.xlu0 %v1006, 32
        %v1043 = vpop.permute.xlu0 %1042
        %1044 = vrot.lane.b32.xlu0 %v1007, 32
        %v1045 = vpop.permute.xlu0 %1044
        %1046 = vrot.lane.b32.xlu0 %v1008, 32
        %v1047 = vpop.permute.xlu0 %1046
        %1048 = vrot.lane.b32.xlu0 %v1009, 32
        %v1049 = vpop.permute.xlu0 %1048
        %1050 = vrot.lane.b32.xlu0 %v1010, 32
        %v1051 = vpop.permute.xlu0 %1050
        %1052 = vrot.lane.b32.xlu0 %v1011, 32
        %v1053 = vpop.permute.xlu0 %1052
        %1054 = vrot.lane.b32.xlu0 %v1012, 32
        %v1055 = vpop.permute.xlu0 %1054
        %1056 = vrot.lane.b32.xlu0 %v1013, 32
        %v1057 = vpop.permute.xlu0 %1056
        %1058 = vrot.lane.b32.xlu0 %v1014, 32
        %v1059 = vpop.permute.xlu0 %1058
        %1060 = vrot.lane.b32.xlu0 %v1015, 32
        %v1061 = vpop.permute.xlu0 %1060
        %1062 = vrot.lane.b32.xlu0 %v1016, 32
        %v1063 = vpop.permute.xlu0 %1062
        %1064 = vrot.lane.b32.xlu0 %v1017, 32
        %v1065 = vpop.permute.xlu0 %1064
        %vm1082 = vcmask 294144
        %1083 = vst.msk [vmem:[#allocation2] sm:$0xff] %vm1082, %v1035
        %1084 = vst.msk [vmem:[#allocation2 + $0x8] sm:$0xff] %vm1082, %v1037
        %1085 = vst.msk [vmem:[#allocation2 + $0x10] sm:$0xff] %vm1082, %v1039
        %1086 = vst.msk [vmem:[#allocation2 + $0x18] sm:$0xff] %vm1082, %v1041
        %1087 = vst.msk [vmem:[#allocation2 + $0x20] sm:$0xff] %vm1082, %v1043
        %1088 = vst.msk [vmem:[#allocation2 + $0x28] sm:$0xff] %vm1082, %v1045
        %1089 = vst.msk [vmem:[#allocation2 + $0x30] sm:$0xff] %vm1082, %v1047
        %1090 = vst.msk [vmem:[#allocation2 + $0x38] sm:$0xff] %vm1082, %v1049
        %1091 = vst.msk [vmem:[#allocation2 + $0x40] sm:$0xff] %vm1082, %v1051
        %1092 = vst.msk [vmem:[#allocation2 + $0x48] sm:$0xff] %vm1082, %v1053
        %1093 = vst.msk [vmem:[#allocation2 + $0x50] sm:$0xff] %vm1082, %v1055
        %1094 = vst.msk [vmem:[#allocation2 + $0x58] sm:$0xff] %vm1082, %v1057
        %1095 = vst.msk [vmem:[#allocation2 + $0x60] sm:$0xff] %vm1082, %v1059
        %1096 = vst.msk [vmem:[#allocation2 + $0x68] sm:$0xff] %vm1082, %v1061
        %1097 = vst.msk [vmem:[#allocation2 + $0x70] sm:$0xff] %vm1082, %v1063
        %1098 = vst.msk [vmem:[#allocation2 + $0x78] sm:$0xff] %vm1082, %v1065
        %v1099 = vld [vmem:[#allocation2] sm:$0xff]
        %v1100 = vld [vmem:[#allocation2 + $0x8] sm:$0xff]
        %v1101 = vld [vmem:[#allocation2 + $0x10] sm:$0xff]
        %v1102 = vld [vmem:[#allocation2 + $0x18] sm:$0xff]
        %v1103 = vld [vmem:[#allocation2 + $0x20] sm:$0xff]
        %v1104 = vld [vmem:[#allocation2 + $0x28] sm:$0xff]
        %v1105 = vld [vmem:[#allocation2 + $0x30] sm:$0xff]
        %v1106 = vld [vmem:[#allocation2 + $0x38] sm:$0xff]
        %v1107 = vld [vmem:[#allocation2 + $0x40] sm:$0xff]
        %v1108 = vld [vmem:[#allocation2 + $0x48] sm:$0xff]
        %v1109 = vld [vmem:[#allocation2 + $0x50] sm:$0xff]
        %v1110 = vld [vmem:[#allocation2 + $0x58] sm:$0xff]
        %v1111 = vld [vmem:[#allocation2 + $0x60] sm:$0xff]
        %v1112 = vld [vmem:[#allocation2 + $0x68] sm:$0xff]
        %v1113 = vld [vmem:[#allocation2 + $0x70] sm:$0xff]
        %v1114 = vld [vmem:[#allocation2 + $0x78] sm:$0xff]
        %vm1115 = vcmask 293888
        %v1117 = vsel %vm1115, %v1099, 0
        %v1120 = vsel %vm1115, %v1100, 0
        %v1123 = vsel %vm1115, %v1101, 0
        %v1126 = vsel %vm1115, %v1102, 0
        %v1129 = vsel %vm1115, %v1103, 0
        %v1132 = vsel %vm1115, %v1104, 0
        %v1135 = vsel %vm1115, %v1105, 0
        %v1138 = vsel %vm1115, %v1106, 0
        %v1141 = vsel %vm1115, %v1107, 0
        %v1144 = vsel %vm1115, %v1108, 0
        %v1147 = vsel %vm1115, %v1109, 0
        %v1150 = vsel %vm1115, %v1110, 0
        %v1153 = vsel %vm1115, %v1111, 0
        %v1156 = vsel %vm1115, %v1112, 0
        %v1159 = vsel %vm1115, %v1113, 0
        %v1162 = vsel %vm1115, %v1114, 0
        %vm1164 = vcmask 1043456
        %v1166 = vsel %vm1164, %v272, 0
        %1168 = vmatprep.subr.mxu0 0.0
        %1169 = vmatpush1.msra.mxu0 %v268
        %1170 = vmatprep.subr.mxu0 0.0
        %1171 = vmatpush1.msra.mxu0 %v269
        %1172 = vmatprep.subr.mxu0 0.0
        %1173 = vmatpush1.msra.mxu0 %v270
        %1174 = vmatprep.subr.mxu0 0.0
        %1175 = vmatpush1.msra.mxu0 %v271
        %1176 = vmatprep.subr.mxu0 0.0
        %1177 = vmatpush1.msra.mxu0 %v1166
        %1178 = vmatprep.subr.mxu0 0.0
        %1179 = vmatpush1.msra.mxu0 0.0
        %1180 = vmatprep.subr.mxu0 0.0
        %1181 = vmatpush1.msra.mxu0 0.0
        %1182 = vmatprep.subr.mxu0 0.0
        %1183 = vmatpush1.msra.mxu0 0.0
        %1184 = vmatprep.subr.mxu0 0.0
        %1185 = vmatpush1.msra.mxu0 0.0
        %1186 = vmatprep.subr.mxu0 0.0
        %1187 = vmatpush1.msra.mxu0 0.0
        %1188 = vmatprep.subr.mxu0 0.0
        %1189 = vmatpush1.msra.mxu0 0.0
        %1190 = vmatprep.subr.mxu0 0.0
        %1191 = vmatpush1.msra.mxu0 0.0
        %1192 = vmatprep.subr.mxu0 0.0
        %1193 = vmatpush1.msra.mxu0 0.0
        %1194 = vmatprep.subr.mxu0 0.0
        %1195 = vmatpush1.msra.mxu0 0.0
        %1196 = vmatprep.subr.mxu0 0.0
        %1197 = vmatpush1.msra.mxu0 0.0
        %1198 = vmatprep.subr.mxu0 0.0
        %1199 = vmatpush1.msra.mxu0 0.0
        %1200 = vmatprep.subr.mxu0 0.0
        %1201 = vmatpush1.msra.mxu0 0.0
        %1202 = vmatprep.subr.mxu0 0.0
        %1203 = vmatpush1.msra.mxu0 0.0
        %1204 = vmatprep.subr.mxu0 0.0
        %1205 = vmatpush1.msra.mxu0 0.0
        %1206 = vmatprep.subr.mxu0 0.0
        %1207 = vmatpush1.msra.mxu0 0.0
        %1208 = vmatprep.subr.mxu0 0.0
        %1209 = vmatpush1.msra.mxu0 0.0
        %1210 = vmatprep.subr.mxu0 0.0
        %1211 = vmatpush1.msra.mxu0 0.0
        %1212 = vmatprep.subr.mxu0 0.0
        %1213 = vmatpush1.msra.mxu0 0.0
        %1214 = vmatprep.subr.mxu0 0.0
        %1215 = vmatpush1.msra.mxu0 0.0
        %1216 = vmatprep.subr.mxu0 0.0
        %1217 = vmatpush1.msra.mxu0 0.0
        %1218 = vmatprep.subr.mxu0 0.0
        %1219 = vmatpush1.msra.mxu0 0.0
        %1220 = vmatprep.subr.mxu0 0.0
        %1221 = vmatpush1.msra.mxu0 0.0
        %1222 = vmatprep.subr.mxu0 0.0
        %1223 = vmatpush1.msra.mxu0 0.0
        %1224 = vmatprep.subr.mxu0 0.0
        %1225 = vmatpush1.msra.mxu0 0.0
        %1226 = vmatprep.subr.mxu0 0.0
        %1227 = vmatpush1.msra.mxu0 0.0
        %1228 = vmatprep.subr.mxu0 0.0
        %1229 = vmatpush1.msra.mxu0 0.0
        %1230 = vmatprep.subr.mxu0 0.0
        %1231 = vmatpush1.msra.mxu0 0.0
        %1232 = vmatprep.mubr.f32.mxu0 0.0
        %1233 = vmatmul.mubr.f32.gmra.mrb[0].mxu0 %v1117
        %v1234 = vpop.f32.mrb[0].mxu0
        %v1235 = vadd.f32 0.0, %v1234
        %v1236 = vpop.f32.mrb[0].mxu0
        %1237 = vmatprep.mubr.f32.mxu0 0.0
        %1238 = vmatmul.mubr.f32.gmra.mrb[0].mxu0 %v1120
        %v1239 = vpop.f32.mrb[0].mxu0
        %v1240 = vadd.f32 0.0, %v1239
        %v1241 = vpop.f32.mrb[0].mxu0
        %1242 = vmatprep.mubr.f32.mxu0 0.0
        %1243 = vmatmul.mubr.f32.gmra.mrb[0].mxu0 %v1123
        %v1244 = vpop.f32.mrb[0].mxu0
        %v1245 = vadd.f32 0.0, %v1244
        %v1246 = vpop.f32.mrb[0].mxu0
        %1247 = vmatprep.mubr.f32.mxu0 0.0
        %1248 = vmatmul.mubr.f32.gmra.mrb[0].mxu0 %v1126
        %v1249 = vpop.f32.mrb[0].mxu0
        %v1250 = vadd.f32 0.0, %v1249
        %v1251 = vpop.f32.mrb[0].mxu0
        %1252 = vmatprep.mubr.f32.mxu0 0.0
        %1253 = vmatmul.mubr.f32.gmra.mrb[0].mxu0 %v1129
        %v1254 = vpop.f32.mrb[0].mxu0
        %v1255 = vadd.f32 0.0, %v1254
        %v1256 = vpop.f32.mrb[0].mxu0
        %1257 = vmatprep.mubr.f32.mxu0 0.0
        %1258 = vmatmul.mubr.f32.gmra.mrb[0].mxu0 %v1132
        %v1259 = vpop.f32.mrb[0].mxu0
        %v1260 = vadd.f32 0.0, %v1259
        %v1261 = vpop.f32.mrb[0].mxu0
        %1262 = vmatprep.mubr.f32.mxu0 0.0
        %1263 = vmatmul.mubr.f32.gmra.mrb[0].mxu0 %v1135
        %v1264 = vpop.f32.mrb[0].mxu0
        %v1265 = vadd.f32 0.0, %v1264
        %v1266 = vpop.f32.mrb[0].mxu0
        %1267 = vmatprep.mubr.f32.mxu0 0.0
        %1268 = vmatmul.mubr.f32.gmra.mrb[0].mxu0 %v1138
        %v1269 = vpop.f32.mrb[0].mxu0
        %v1270 = vadd.f32 0.0, %v1269
        %v1271 = vpop.f32.mrb[0].mxu0
        %1272 = vmatprep.mubr.f32.mxu0 0.0
        %1273 = vmatmul.mubr.f32.gmra.mrb[0].mxu0 %v1141
        %v1274 = vpop.f32.mrb[0].mxu0
        %v1275 = vadd.f32 0.0, %v1274
        %v1276 = vpop.f32.mrb[0].mxu0
        %1277 = vmatprep.mubr.f32.mxu0 0.0
        %1278 = vmatmul.mubr.f32.gmra.mrb[0].mxu0 %v1144
        %v1279 = vpop.f32.mrb[0].mxu0
        %v1280 = vadd.f32 0.0, %v1279
        %v1281 = vpop.f32.mrb[0].mxu0
        %1282 = vmatprep.mubr.f32.mxu0 0.0
        %1283 = vmatmul.mubr.f32.gmra.mrb[0].mxu0 %v1147
        %v1284 = vpop.f32.mrb[0].mxu0
        %v1285 = vadd.f32 0.0, %v1284
        %v1286 = vpop.f32.mrb[0].mxu0
        %1287 = vmatprep.mubr.f32.mxu0 0.0
        %1288 = vmatmul.mubr.f32.gmra.mrb[0].mxu0 %v1150
        %v1289 = vpop.f32.mrb[0].mxu0
        %v1290 = vadd.f32 0.0, %v1289
        %v1291 = vpop.f32.mrb[0].mxu0
        %1292 = vmatprep.mubr.f32.mxu0 0.0
        %1293 = vmatmul.mubr.f32.gmra.mrb[0].mxu0 %v1153
        %v1294 = vpop.f32.mrb[0].mxu0
        %v1295 = vadd.f32 0.0, %v1294
        %v1296 = vpop.f32.mrb[0].mxu0
        %1297 = vmatprep.mubr.f32.mxu0 0.0
        %1298 = vmatmul.mubr.f32.gmra.mrb[0].mxu0 %v1156
        %v1299 = vpop.f32.mrb[0].mxu0
        %v1300 = vadd.f32 0.0, %v1299
        %v1301 = vpop.f32.mrb[0].mxu0
        %1302 = vmatprep.mubr.f32.mxu0 0.0
        %1303 = vmatmul.mubr.f32.gmra.mrb[0].mxu0 %v1159
        %v1304 = vpop.f32.mrb[0].mxu0
        %v1305 = vadd.f32 0.0, %v1304
        %v1306 = vpop.f32.mrb[0].mxu0
        %1307 = vmatprep.mubr.f32.mxu0 0.0
        %1308 = vmatmul.mubr.f32.gmra.mrb[0].mxu0 %v1162
        %v1309 = vpop.f32.mrb[0].mxu0
        %v1310 = vadd.f32 0.0, %v1309
        %v1311 = vpop.f32.mrb[0].mxu0
        %1312 = vdwg.mxu0
        %s1313 = smul.u32 %s274, 128
        %s1314 = scalar_lea.vmem [#allocation3], %s1313
        %1315 = vst [vmem:[%s1314] sm:$0xff] %v1235
        %1316 = vst [vmem:[%s1314 + $0x8] sm:$0xff] %v1240
        %1317 = vst [vmem:[%s1314 + $0x10] sm:$0xff] %v1245
        %1318 = vst [vmem:[%s1314 + $0x18] sm:$0xff] %v1250
        %1319 = vst [vmem:[%s1314 + $0x20] sm:$0xff] %v1255
        %1320 = vst [vmem:[%s1314 + $0x28] sm:$0xff] %v1260
        %1321 = vst [vmem:[%s1314 + $0x30] sm:$0xff] %v1265
        %1322 = vst [vmem:[%s1314 + $0x38] sm:$0xff] %v1270
        %1323 = vst [vmem:[%s1314 + $0x40] sm:$0xff] %v1275
        %1324 = vst [vmem:[%s1314 + $0x48] sm:$0xff] %v1280
        %1325 = vst [vmem:[%s1314 + $0x50] sm:$0xff] %v1285
        %1326 = vst [vmem:[%s1314 + $0x58] sm:$0xff] %v1290
        %1327 = vst [vmem:[%s1314 + $0x60] sm:$0xff] %v1295
        %1328 = vst [vmem:[%s1314 + $0x68] sm:$0xff] %v1300
        %1329 = vst [vmem:[%s1314 + $0x70] sm:$0xff] %v1305
        %1330 = vst [vmem:[%s1314 + $0x78] sm:$0xff] %v1310
        %v1331 = vadd.f32 %v1235, %v1240
        %v1332 = vadd.f32 %v1331, %v1245
        %v1333 = vadd.f32 %v1332, %v1250
        %v1334 = vadd.f32 %v1333, %v1255
        %v1335 = vadd.f32 %v1334, %v1260
        %v1336 = vadd.f32 %v1335, %v1265
        %v1337 = vadd.f32 %v1336, %v1270
        %v1338 = vadd.f32 %v1337, %v1275
        %v1339 = vadd.f32 %v1338, %v1280
        %v1340 = vadd.f32 %v1339, %v1285
        %v1341 = vadd.f32 %v1340, %v1290
        %v1342 = vadd.f32 %v1341, %v1295
        %v1343 = vadd.f32 %v1342, %v1300
        %v1344 = vadd.f32 %v1343, %v1305
        %v1345 = vadd.f32 %v1344, %v1310
        %v1346 = vrot.slane %v1345, 4
        %v1347 = vadd.f32 %v1345, %v1346
        %v1348 = vrot.slane %v1347, 2
        %v1349 = vadd.f32 %v1347, %v1348
        %v1350 = vrot.slane %v1349, 1
        %v1351 = vadd.f32 %v1349, %v1350
        %v1352 = vadd.f32 %v279, %v1351
        %v1353 = vmul.f32 %v1235, %v1235
        %v1354 = vmul.f32 %v1240, %v1240
        %v1355 = vmul.f32 %v1245, %v1245
        %v1356 = vmul.f32 %v1250, %v1250
        %v1357 = vmul.f32 %v1255, %v1255
        %v1358 = vmul.f32 %v1260, %v1260
        %v1359 = vmul.f32 %v1265, %v1265
        %v1360 = vmul.f32 %v1270, %v1270
        %v1361 = vmul.f32 %v1275, %v1275
        %v1362 = vmul.f32 %v1280, %v1280
        %v1363 = vmul.f32 %v1285, %v1285
        %v1364 = vmul.f32 %v1290, %v1290
        %v1365 = vmul.f32 %v1295, %v1295
        %v1366 = vmul.f32 %v1300, %v1300
        %v1367 = vmul.f32 %v1305, %v1305
        %v1368 = vmul.f32 %v1310, %v1310
        %v1369 = vadd.f32 %v1353, %v1354
        %v1370 = vadd.f32 %v1369, %v1355
        %v1371 = vadd.f32 %v1370, %v1356
        %v1372 = vadd.f32 %v1371, %v1357
        %v1373 = vadd.f32 %v1372, %v1358
        %v1374 = vadd.f32 %v1373, %v1359
        %v1375 = vadd.f32 %v1374, %v1360
        %v1376 = vadd.f32 %v1375, %v1361
        %v1377 = vadd.f32 %v1376, %v1362
        %v1378 = vadd.f32 %v1377, %v1363
        %v1379 = vadd.f32 %v1378, %v1364
        %v1380 = vadd.f32 %v1379, %v1365
        %v1381 = vadd.f32 %v1380, %v1366
        %v1382 = vadd.f32 %v1381, %v1367
        %v1383 = vadd.f32 %v1382, %v1368
        %v1384 = vrot.slane %v1383, 4
        %v1385 = vadd.f32 %v1383, %v1384
        %v1386 = vrot.slane %v1385, 2
        %v1387 = vadd.f32 %v1385, %v1386
        %v1388 = vrot.slane %v1387, 1
        %v1389 = vadd.f32 %v1387, %v1388
        %v1390 = vadd.f32 %v280, %v1389
      $region41: #{basic_conv2d.1} parent=35 // loop_footer
        %s278 = sadd.s32 1, %s274
      $region42: #{basic_conv2d.1} parent=35 // loop_footer_branch
        %273 = sbr.rel target = $region38
      $region43: #{basic_conv2d.1} parent=35 // loop_exit
        _
      %v1391 = vmul.f32 %v279, 0.00390625
      %v1392 = vmul.f32 %v280, 0.00390625
      %v1393 = vmul.f32 %v1391, %v1391
      %v1394 = vsub.f32 %v1392, %v1393
      %v1395 = vmax.f32 %v1394, 0.0
      %v1396 = vadd.f32 %v1395, 1e-05
      %v1397 = vrsqrt.pop %v1396
      %v1398 = vld [vmem:[%s253] sm:$0x1]
      %v1399 = vmul.f32 %v1397, %v1398
      %v1400 = vld [vmem:[%s256] sm:$0x1]
      %v1401 = vmul.f32 %v1391, %v1399
      %v1402 = vsub.f32 %v1400, %v1401
      %v1403 = vld [vmem:[#allocation3] sm:$0xff]
      %v1404 = vld [vmem:[#allocation3 + $0x8] sm:$0xff]
      %v1405 = vld [vmem:[#allocation3 + $0x10] sm:$0xff]
      %v1406 = vld [vmem:[#allocation3 + $0x18] sm:$0xff]
      %v1407 = vld [vmem:[#allocation3 + $0x20] sm:$0xff]
      %v1408 = vld [vmem:[#allocation3 + $0x28] sm:$0xff]
      %v1409 = vld [vmem:[#allocation3 + $0x30] sm:$0xff]
      %v1410 = vld [vmem:[#allocation3 + $0x38] sm:$0xff]
      %v1411 = vld [vmem:[#allocation3 + $0x40] sm:$0xff]
      %v1412 = vld [vmem:[#allocation3 + $0x48] sm:$0xff]
      %v1413 = vld [vmem:[#allocation3 + $0x50] sm:$0xff]
      %v1414 = vld [vmem:[#allocation3 + $0x58] sm:$0xff]
      %v1415 = vld [vmem:[#allocation3 + $0x60] sm:$0xff]
      %v1416 = vld [vmem:[#allocation3 + $0x68] sm:$0xff]
      %v1417 = vld [vmem:[#allocation3 + $0x70] sm:$0xff]
      %v1418 = vld [vmem:[#allocation3 + $0x78] sm:$0xff]
      %v1419 = vlaneseq
      %v1420 = vshrl.u32 %v1419, 7
      %v1421 = vsub.s32 0, %v1420
      %v1422 = vrot.slane %v1399, %v1421
      %v1423 = vmul.f32 %v1403, %v1422
      %v1424 = vmul.f32 %v1404, %v1422
      %v1425 = vmul.f32 %v1405, %v1422
      %v1426 = vmul.f32 %v1406, %v1422
      %v1427 = vmul.f32 %v1407, %v1422
      %v1428 = vmul.f32 %v1408, %v1422
      %v1429 = vmul.f32 %v1409, %v1422
      %v1430 = vmul.f32 %v1410, %v1422
      %v1431 = vmul.f32 %v1411, %v1422
      %v1432 = vmul.f32 %v1412, %v1422
      %v1433 = vmul.f32 %v1413, %v1422
      %v1434 = vmul.f32 %v1414, %v1422
      %v1435 = vmul.f32 %v1415, %v1422
      %v1436 = vmul.f32 %v1416, %v1422
      %v1437 = vmul.f32 %v1417, %v1422
      %v1438 = vmul.f32 %v1418, %v1422
      %v1440 = vlaneseq
      %v1441 = vshrl.u32 %v1440, 7
      %v1442 = vsub.s32 0, %v1441
      %v1443 = vrot.slane %v1402, %v1442
      %v1445 = vadd.f32 %v1423, %v1443
      %v1446 = vadd.f32 %v1424, %v1443
      %v1447 = vadd.f32 %v1425, %v1443
      %v1448 = vadd.f32 %v1426, %v1443
      %v1449 = vadd.f32 %v1427, %v1443
      %v1450 = vadd.f32 %v1428, %v1443
      %v1451 = vadd.f32 %v1429, %v1443
      %v1452 = vadd.f32 %v1430, %v1443
      %v1453 = vadd.f32 %v1431, %v1443
      %v1454 = vadd.f32 %v1432, %v1443
      %v1455 = vadd.f32 %v1433, %v1443
      %v1456 = vadd.f32 %v1434, %v1443
      %v1457 = vadd.f32 %v1435, %v1443
      %v1458 = vadd.f32 %v1436, %v1443
      %v1459 = vadd.f32 %v1437, %v1443
      %v1460 = vadd.f32 %v1438, %v1443
      %v1461 = vmax.f32 %v1445, 0.0
      %v1462 = vmax.f32 %v1446, 0.0
      %v1463 = vmax.f32 %v1447, 0.0
      %v1464 = vmax.f32 %v1448, 0.0
      %v1465 = vmax.f32 %v1449, 0.0
      %v1466 = vmax.f32 %v1450, 0.0
      %v1467 = vmax.f32 %v1451, 0.0
      %v1468 = vmax.f32 %v1452, 0.0
      %v1469 = vmax.f32 %v1453, 0.0
      %v1470 = vmax.f32 %v1454, 0.0
      %v1471 = vmax.f32 %v1455, 0.0
      %v1472 = vmax.f32 %v1456, 0.0
      %v1473 = vmax.f32 %v1457, 0.0
      %v1474 = vmax.f32 %v1458, 0.0
      %v1475 = vmax.f32 %v1459, 0.0
      %v1476 = vmax.f32 %v1460, 0.0
      %1477 = vxpose.xlu0.b32.start [1/16] %v1461, 128
      %1478 = vxpose.xlu0.b32.cont [2/16] %v1462, 128
      %1479 = vxpose.xlu0.b32.cont [3/16] %v1463, 128
      %1480 = vxpose.xlu0.b32.cont [4/16] %v1464, 128
      %1481 = vxpose.xlu0.b32.cont [5/16] %v1465, 128
      %1482 = vxpose.xlu0.b32.cont [6/16] %v1466, 128
      %1483 = vxpose.xlu0.b32.cont [7/16] %v1467, 128
      %1484 = vxpose.xlu0.b32.cont [8/16] %v1468, 128
      %1485 = vxpose.xlu0.b32.cont [9/16] %v1469, 128
      %1486 = vxpose.xlu0.b32.cont [10/16] %v1470, 128
      %1487 = vxpose.xlu0.b32.cont [11/16] %v1471, 128
      %1488 = vxpose.xlu0.b32.cont [12/16] %v1472, 128
      %1489 = vxpose.xlu0.b32.cont [13/16] %v1473, 128
      %1490 = vxpose.xlu0.b32.cont [14/16] %v1474, 128
      %1491 = vxpose.xlu0.b32.cont [15/16] %v1475, 128
      %1492 = vxpose.xlu0.b32.end [16/16] %v1476, 128
      %v1493 = vpop.trf.xlu0
      %v1494 = vpop.trf.xlu0
      %v1495 = vpop.trf.xlu0
      %v1496 = vpop.trf.xlu0
      %v1497 = vpop.trf.xlu0
      %v1498 = vpop.trf.xlu0
      %v1499 = vpop.trf.xlu0
      %v1500 = vpop.trf.xlu0
      %v1501 = vpop.trf.xlu0
      %v1502 = vpop.trf.xlu0
      %v1503 = vpop.trf.xlu0
      %v1504 = vpop.trf.xlu0
      %v1505 = vpop.trf.xlu0
      %v1506 = vpop.trf.xlu0
      %v1507 = vpop.trf.xlu0
      %v1508 = vpop.trf.xlu0
      %1509 = vst [vmem:[%s266] sm:$0xff] %v1493
      %1510 = vst [vmem:[%s266 + $0x10] sm:$0xff] %v1494
      %1511 = vst [vmem:[%s266 + $0x20] sm:$0xff] %v1495
      %1512 = vst [vmem:[%s266 + $0x30] sm:$0xff] %v1496
      %1513 = vst [vmem:[%s266 + $0x40] sm:$0xff] %v1497
      %1514 = vst [vmem:[%s266 + $0x50] sm:$0xff] %v1498
      %1515 = vst [vmem:[%s266 + $0x60] sm:$0xff] %v1499
      %1516 = vst [vmem:[%s266 + $0x70] sm:$0xff] %v1500
      %1517 = vst [vmem:[%s266 + $0x80] sm:$0xff] %v1501
      %1518 = vst [vmem:[%s266 + $0x90] sm:$0xff] %v1502
      %1519 = vst [vmem:[%s266 + $0xa0] sm:$0xff] %v1503
      %1520 = vst [vmem:[%s266 + $0xb0] sm:$0xff] %v1504
      %1521 = vst [vmem:[%s266 + $0xc0] sm:$0xff] %v1505
      %1522 = vst [vmem:[%s266 + $0xd0] sm:$0xff] %v1506
      %1523 = vst [vmem:[%s266 + $0xe0] sm:$0xff] %v1507
      %1524 = vst [vmem:[%s266 + $0xf0] sm:$0xff] %v1508
      %v1525 = vld [vmem:[#allocation3 + $0x80] sm:$0xff]
      %v1526 = vld [vmem:[#allocation3 + $0x88] sm:$0xff]
      %v1527 = vld [vmem:[#allocation3 + $0x90] sm:$0xff]
      %v1528 = vld [vmem:[#allocation3 + $0x98] sm:$0xff]
      %v1529 = vld [vmem:[#allocation3 + $0xa0] sm:$0xff]
      %v1530 = vld [vmem:[#allocation3 + $0xa8] sm:$0xff]
      %v1531 = vld [vmem:[#allocation3 + $0xb0] sm:$0xff]
      %v1532 = vld [vmem:[#allocation3 + $0xb8] sm:$0xff]
      %v1533 = vld [vmem:[#allocation3 + $0xc0] sm:$0xff]
      %v1534 = vld [vmem:[#allocation3 + $0xc8] sm:$0xff]
      %v1535 = vld [vmem:[#allocation3 + $0xd0] sm:$0xff]
      %v1536 = vld [vmem:[#allocation3 + $0xd8] sm:$0xff]
      %v1537 = vld [vmem:[#allocation3 + $0xe0] sm:$0xff]
      %v1538 = vld [vmem:[#allocation3 + $0xe8] sm:$0xff]
      %v1539 = vld [vmem:[#allocation3 + $0xf0] sm:$0xff]
      %v1540 = vld [vmem:[#allocation3 + $0xf8] sm:$0xff]
      %v1541 = vmul.f32 %v1525, %v1422
      %v1542 = vmul.f32 %v1526, %v1422
      %v1543 = vmul.f32 %v1527, %v1422
      %v1544 = vmul.f32 %v1528, %v1422
      %v1545 = vmul.f32 %v1529, %v1422
      %v1546 = vmul.f32 %v1530, %v1422
      %v1547 = vmul.f32 %v1531, %v1422
      %v1548 = vmul.f32 %v1532, %v1422
      %v1549 = vmul.f32 %v1533, %v1422
      %v1550 = vmul.f32 %v1534, %v1422
      %v1551 = vmul.f32 %v1535, %v1422
      %v1552 = vmul.f32 %v1536, %v1422
      %v1553 = vmul.f32 %v1537, %v1422
      %v1554 = vmul.f32 %v1538, %v1422
      %v1555 = vmul.f32 %v1539, %v1422
      %v1556 = vmul.f32 %v1540, %v1422
      %v1557 = vadd.f32 %v1541, %v1443
      %v1558 = vadd.f32 %v1542, %v1443
      %v1559 = vadd.f32 %v1543, %v1443
      %v1560 = vadd.f32 %v1544, %v1443
      %v1561 = vadd.f32 %v1545, %v1443
      %v1562 = vadd.f32 %v1546, %v1443
      %v1563 = vadd.f32 %v1547, %v1443
      %v1564 = vadd.f32 %v1548, %v1443
      %v1565 = vadd.f32 %v1549, %v1443
      %v1566 = vadd.f32 %v1550, %v1443
      %v1567 = vadd.f32 %v1551, %v1443
      %v1568 = vadd.f32 %v1552, %v1443
      %v1569 = vadd.f32 %v1553, %v1443
      %v1570 = vadd.f32 %v1554, %v1443
      %v1571 = vadd.f32 %v1555, %v1443
      %v1572 = vadd.f32 %v1556, %v1443
      %v1573 = vmax.f32 %v1557, 0.0
      %v1574 = vmax.f32 %v1558, 0.0
      %v1575 = vmax.f32 %v1559, 0.0
      %v1576 = vmax.f32 %v1560, 0.0
      %v1577 = vmax.f32 %v1561, 0.0
      %v1578 = vmax.f32 %v1562, 0.0
      %v1579 = vmax.f32 %v1563, 0.0
      %v1580 = vmax.f32 %v1564, 0.0
      %v1581 = vmax.f32 %v1565, 0.0
      %v1582 = vmax.f32 %v1566, 0.0
      %v1583 = vmax.f32 %v1567, 0.0
      %v1584 = vmax.f32 %v1568, 0.0
      %v1585 = vmax.f32 %v1569, 0.0
      %v1586 = vmax.f32 %v1570, 0.0
      %v1587 = vmax.f32 %v1571, 0.0
      %v1588 = vmax.f32 %v1572, 0.0
      %1589 = vxpose.xlu0.b32.start [1/16] %v1573, 128
      %1590 = vxpose.xlu0.b32.cont [2/16] %v1574, 128
      %1591 = vxpose.xlu0.b32.cont [3/16] %v1575, 128
      %1592 = vxpose.xlu0.b32.cont [4/16] %v1576, 128
      %1593 = vxpose.xlu0.b32.cont [5/16] %v1577, 128
      %1594 = vxpose.xlu0.b32.cont [6/16] %v1578, 128
      %1595 = vxpose.xlu0.b32.cont [7/16] %v1579, 128
      %1596 = vxpose.xlu0.b32.cont [8/16] %v1580, 128
      %1597 = vxpose.xlu0.b32.cont [9/16] %v1581, 128
      %1598 = vxpose.xlu0.b32.cont [10/16] %v1582, 128
      %1599 = vxpose.xlu0.b32.cont [11/16] %v1583, 128
      %1600 = vxpose.xlu0.b32.cont [12/16] %v1584, 128
      %1601 = vxpose.xlu0.b32.cont [13/16] %v1585, 128
      %1602 = vxpose.xlu0.b32.cont [14/16] %v1586, 128
      %1603 = vxpose.xlu0.b32.cont [15/16] %v1587, 128
      %1604 = vxpose.xlu0.b32.end [16/16] %v1588, 128
      %v1605 = vpop.trf.xlu0
      %v1606 = vpop.trf.xlu0
      %v1607 = vpop.trf.xlu0
      %v1608 = vpop.trf.xlu0
      %v1609 = vpop.trf.xlu0
      %v1610 = vpop.trf.xlu0
      %v1611 = vpop.trf.xlu0
      %v1612 = vpop.trf.xlu0
      %v1613 = vpop.trf.xlu0
      %v1614 = vpop.trf.xlu0
      %v1615 = vpop.trf.xlu0
      %v1616 = vpop.trf.xlu0
      %v1617 = vpop.trf.xlu0
      %v1618 = vpop.trf.xlu0
      %v1619 = vpop.trf.xlu0
      %v1620 = vpop.trf.xlu0
      %1621 = vst [vmem:[%s266 + $0x8] sm:$0xff] %v1605
      %1622 = vst [vmem:[%s266 + $0x18] sm:$0xff] %v1606
      %1623 = vst [vmem:[%s266 + $0x28] sm:$0xff] %v1607
      %1624 = vst [vmem:[%s266 + $0x38] sm:$0xff] %v1608
      %1625 = vst [vmem:[%s266 + $0x48] sm:$0xff] %v1609
      %1626 = vst [vmem:[%s266 + $0x58] sm:$0xff] %v1610
      %1627 = vst [vmem:[%s266 + $0x68] sm:$0xff] %v1611
      %1628 = vst [vmem:[%s266 + $0x78] sm:$0xff] %v1612
      %1629 = vst [vmem:[%s266 + $0x88] sm:$0xff] %v1613
      %1630 = vst [vmem:[%s266 + $0x98] sm:$0xff] %v1614
      %1631 = vst [vmem:[%s266 + $0xa8] sm:$0xff] %v1615
      %1632 = vst [vmem:[%s266 + $0xb8] sm:$0xff] %v1616
      %1633 = vst [vmem:[%s266 + $0xc8] sm:$0xff] %v1617
      %1634 = vst [vmem:[%s266 + $0xd8] sm:$0xff] %v1618
      %1635 = vst [vmem:[%s266 + $0xe8] sm:$0xff] %v1619
      %1636 = vst [vmem:[%s266 + $0xf8] sm:$0xff] %v1620
      %s1637 = smul.u32 16, %s20
      %p1638 = scmp.lt.s32.totalorder %s19, 1
      %s1639 = scalar_select %p1638, %s19, 1
      %p1640 = scmp.lt.s32.totalorder %s1637, 15
      %s1641 = scalar_select %p1640, %s1637, 15
      %s1642 = smul.addr %s1641, 2
      %s1643 = smul.addr %s1639, 32
      %s1644 = sadd.s32 %s1642, %s1643
      %s1645 = smul.addr %s1644, 8
      %s1646 = scalar_lea.vmem %s4, %s1645
      // Predicated region
      $region44: #{basic_conv2d.1} parent=35 // pred_check
        %p1647 = pneg %p151
      $region45: #{basic_conv2d.1} parent=35 // pred_check_branch
        %1649 = sbr.rel (%p1647) target = $region47
      $region46: #{basic_conv2d.1} parent=35 // pred_region
        %s1650 = smul.u32 16, %s20
      $region47: #{basic_conv2d.1} parent=35 // pred_fallthru
        _
    $region36: #{basic_conv2d.1} parent=5 // pred_fallthru
      _
    %p1651 = scmp.le.s32.totalorder 2, %s10
    // Predicated region
    $region48: #{basic_conv2d.1} parent=5 // pred_check
      %p1652 = pneg %p1651
    $region49: #{basic_conv2d.1} parent=5 // pred_check_branch
      %1654 = sbr.rel (%p1652) target = $region51
    $region50: #{basic_conv2d.1} parent=5 // pred_region
      %s1655 = ssub.s32 %s10, 2
      // Predicated region
      $region52: #{basic_conv2d.1} parent=50 // pred_check
        %p1656 = pneg %p157
      $region53: #{basic_conv2d.1} parent=50 // pred_check_branch
        %1658 = sbr.rel (%p1656) target = $region55
      $region54: #{basic_conv2d.1} parent=50 // pred_region
        %s1659 = smul.u32 16, %s22
        %p1660 = scmp.lt.s32.totalorder %s21, 1
        %s1661 = scalar_select %p1660, %s21, 1
        %p1662 = scmp.lt.s32.totalorder %s1659, 15
        %s1663 = scalar_select %p1662, %s1659, 15
        %s1664 = smul.addr %s1663, 2
        %s1665 = smul.addr %s1661, 32
        %s1666 = sadd.s32 %s1664, %s1665
        %s1667 = smul.addr %s1666, 8
        %s1668 = scalar_lea.vmem %s4, %s1667
      $region55: #{basic_conv2d.1} parent=50 // pred_fallthru
        _
    $region51: #{basic_conv2d.1} parent=5 // pred_fallthru
      _
  $region6: #{basic_conv2d.1} parent=0 // loop_footer
    %s14 = sadd.s32 1, %s10
  $region7: #{basic_conv2d.1} parent=0 // loop_footer_branch
    %9 = sbr.rel target = $region3
  $region8: #{basic_conv2d.1} parent=0 // loop_exit
    _

</llo_original>
